<compile_context>
chip_gen: v5e
topology: v5e:2x2
jax: 0.10.0
libtpu: 0.0.40
codegen_flags: <defaults>
</compile_context>

<pallas_src>
import jax
import jax.numpy as jnp
from jax.experimental import pallas as pl
from jax.experimental.pallas import tpu as pltpu

LANES = 128
SUBLANES = 8


def _round_up(n: int, m: int) -> int:
    return ((n + m - 1) // m) * m


# ------------------------------- kernel -------------------------------------


def rnn_block_kernel(x_ref, wi_ref, wh_ref, wo_ref, bih_ref, bo_ref,
                     h_out_ref, y_out_ref, h_carry):
    """One (batch block, time block) grid step.

    x_ref    : (bb, tb, Din)     input slice (compute dtype)
    wi_ref   : (Din, Hp)         input->hidden weight
    wh_ref   : (Hp, Hp)          hidden->hidden weight
    wo_ref   : (Hp, Hp)          output-head weight
    bih_ref  : (1, Hp)  f32      fused bias  bi + bh
    bo_ref   : (1, Hp)  f32      output-head bias
    h_out_ref: (bb, tb, Hp) f32  hidden states for this block
    y_out_ref: (bb, tb, Hp) f32  output states for this block
    h_carry  : (bb, Hp) f32 VMEM scratch; persists across time-grid steps
    """
    # t == 0  <->  hidden_prev is None in the PyTorch module -> zeros.
    @pl.when(pl.program_id(1) == 0)
    def _():
        h_carry[...] = jnp.zeros_like(h_carry)

    bb, tb, din = x_ref.shape
    hp = wh_ref.shape[1]

    # ---- parallel prologue: input projection for all tb timesteps at once --
    x = x_ref[...].reshape(bb * tb, din)
    xproj = jnp.dot(x, wi_ref[...], preferred_element_type=jnp.float32)
    xproj = (xproj + bih_ref[...]).reshape(bb, tb, hp)            # f32

    wh = wh_ref[...]  # hoisted out of the time loop

    # ---- serial recurrence: only h_{t-1} @ wh is left on the critical path --
    # TODO(synk): at production tb/H switch to lax.fori_loop(..., unroll=2/4)
    # to bound vreg live ranges; tb is tiny here so a static unroll is fine.
    h_prev = h_carry[...]                                         # f32
    for i in range(tb):
        hh = jnp.dot(h_prev.astype(wh.dtype), wh,
                     preferred_element_type=jnp.float32)
        h_prev = jnp.maximum(xproj[:, i, :] + hh, 0.0)
        h_out_ref[:, i, :] = h_prev.astype(h_out_ref.dtype)
    h_carry[...] = h_prev

    # ---- parallel epilogue: output head over the whole block ---------------
    h_block = h_out_ref[...].reshape(bb * tb, hp)
    y = jnp.dot(h_block.astype(wo_ref.dtype), wo_ref[...],
                preferred_element_type=jnp.float32) + bo_ref[...]
    y_out_ref[...] = y.reshape(bb, tb, hp).astype(y_out_ref.dtype)


# ------------------------------- wrapper ------------------------------------


def _rnn_forward_impl(sequence, params, *, time_block, batch_block,
                      compute_dtype, single_buffer_weights):
    B, T, Din = sequence.shape
    H = params["wi"].shape[1]
    out_dtype = sequence.dtype

    # Pad hidden dim to a 128-lane multiple (lane-dense stores, aligned MXU
    # tiles). Padded rows/cols are zero so real outputs are unchanged.
    Hp = _round_up(H, LANES)

    def pad2(w, rows, cols):
        return jnp.pad(w, ((0, rows - w.shape[0]), (0, cols - w.shape[1])))

    wi = pad2(params["wi"], Din, Hp).astype(compute_dtype)          # (Din, Hp)
    wh = pad2(params["wh"], Hp, Hp).astype(compute_dtype)           # (Hp, Hp)
    wo = pad2(params["wo"], Hp, Hp).astype(compute_dtype)           # (Hp, Hp)
    bih = pad2((params["bi"] + params["bh"]).reshape(1, H), 1, Hp).astype(jnp.float32)
    bo = pad2(params["bo"].reshape(1, H), 1, Hp).astype(jnp.float32)

    # Time / batch blocking with padding (no degenerate grids for odd T/B).
    tb = min(time_block, T)
    if tb < T:
        tb = max(SUBLANES, (tb // SUBLANES) * SUBLANES)   # sublane-aligned block
    Tp = _round_up(T, tb)
    bb = min(batch_block, B)
    Bp = _round_up(B, bb)

    x = sequence.astype(compute_dtype)
    if (Bp, Tp) != (B, T):
        x = jnp.pad(x, ((0, Bp - B), (0, Tp - T), (0, 0)))

    def const_spec(shape):
        idx = lambda b, t: (0,) * len(shape)
        if single_buffer_weights:
            # Constant index_map -> never re-DMA'd; single-buffer so the
            # weights don't occupy 2x VMEM (decisive on v7x 64 MiB / v5e).
            return pl.BlockSpec(shape, idx, pipeline_mode=pl.Buffered(1))
        return pl.BlockSpec(shape, idx)

    grid = (Bp // bb, Tp // tb)

    h_seq, y_seq = pl.pallas_call(
        rnn_block_kernel,
        out_shape=(jax.ShapeDtypeStruct((Bp, Tp, Hp), jnp.float32),
                   jax.ShapeDtypeStruct((Bp, Tp, Hp), jnp.float32)),
        grid_spec=pltpu.PrefetchScalarGridSpec(
            num_scalar_prefetch=0,
            grid=grid,
            in_specs=[
                pl.BlockSpec((bb, tb, Din), lambda b, t: (b, t, 0)),   # x
                const_spec((Din, Hp)),                                 # wi
                const_spec((Hp, Hp)),                                  # wh
                const_spec((Hp, Hp)),                                  # wo
                const_spec((1, Hp)),                                   # bi+bh
                const_spec((1, Hp)),                                   # bo
            ],
            out_specs=[
                pl.BlockSpec((bb, tb, Hp), lambda b, t: (b, t, 0)),    # h
                pl.BlockSpec((bb, tb, Hp), lambda b, t: (b, t, 0)),    # y
            ],
            scratch_shapes=[pltpu.VMEM((bb, Hp), jnp.float32)],        # carry
        ),
        # Batch blocks are independent -> "parallel" (v7x megacore); the time
        # axis carries the recurrence -> "arbitrary".
        # TODO(synk): at production sizes set vmem_limit_bytes per generation
        # (v7x: 64 MiB physical) and re-derive time_block / batch_block.
        compiler_params=pltpu.CompilerParams(
            dimension_semantics=("parallel", "arbitrary")),
    )(x, wi, wh, wo, bih, bo)

    hidden = h_seq[:B, :T, :H].astype(out_dtype)
    output = y_seq[:B, :T, :H].astype(out_dtype)
    return hidden, output


def rnn_forward(sequence, params, *, time_block=16, batch_block=8,
                compute_dtype=jnp.bfloat16):
    """Matches RNN.forward: returns (hidden_states, output_states), each of
    shape (B, T, hidden_dim) in sequence.dtype."""
    kwargs = dict(time_block=time_block, batch_block=batch_block,
                  compute_dtype=compute_dtype)
    try:
        out = _rnn_forward_impl(sequence, params,
                                single_buffer_weights=True, **kwargs)
        return jax.block_until_ready(out)
    except Exception:
        # pl.Buffered(1) single-buffering not supported on this jax/libtpu ->
        # fall back to default double buffering (correctness unchanged).
        return _rnn_forward_impl(sequence, params,
                                 single_buffer_weights=False, **kwargs)


# ------------------------- params & pure-JAX reference ----------------------


def init_params(key, input_dim, hidden_dim):
    """Mimics nn.Linear's U(-1/sqrt(fan_in), 1/sqrt(fan_in)); weights stored
    transposed, i.e. (in_features, out_features)."""
    k = jax.random.split(key, 6)
    bi2h = 1.0 / jnp.sqrt(input_dim)
    bh2h = 1.0 / jnp.sqrt(hidden_dim)
    return {
        "wi": jax.random.uniform(k[0], (input_dim, hidden_dim), jnp.float32, -bi2h, bi2h),
        "bi": jax.random.uniform(k[1], (1, hidden_dim), jnp.float32, -bi2h, bi2h),
        "wh": jax.random.uniform(k[2], (hidden_dim, hidden_dim), jnp.float32, -bh2h, bh2h),
        "bh": jax.random.uniform(k[3], (1, hidden_dim), jnp.float32, -bh2h, bh2h),
        "wo": jax.random.uniform(k[4], (hidden_dim, hidden_dim), jnp.float32, -bh2h, bh2h),
        "bo": jax.random.uniform(k[5], (1, hidden_dim), jnp.float32, -bh2h, bh2h),
    }


def rnn_forward_ref(sequence, params):
    """Pure-JAX reference of the PyTorch forward, for correctness checks."""
    B, T, _ = sequence.shape
    H = params["wi"].shape[1]
    h = jnp.zeros((B, H), jnp.float32)
    hs, ys = [], []
    for i in range(T):
        x = sequence[:, i, :]
        h = jax.nn.relu(x @ params["wi"] + params["bi"]
                        + h @ params["wh"] + params["bh"])
        y = h @ params["wo"] + params["bo"]
        hs.append(h)
        ys.append(y)
    return jnp.stack(hs, axis=1), jnp.stack(ys, axis=1)


# ------------------------------ demo / check --------------------------------


if __name__ == "__main__":
    batch, seq_len, input_dim, hidden_dim = 2, 8, 16, 32

    key = jax.random.PRNGKey(0)
    k_seq, k_par = jax.random.split(key)
    sequence = jax.random.normal(k_seq, (batch, seq_len, input_dim), jnp.float32)
    params = init_params(k_par, input_dim, hidden_dim)

    h_ref, y_ref = rnn_forward_ref(sequence, params)

    # f32 path: tight check against the pure-JAX reference.
    h_f32, y_f32 = rnn_forward(sequence, params, compute_dtype=jnp.float32)
    jax.block_until_ready((h_f32, y_f32))
    assert h_f32.shape == (batch, seq_len, hidden_dim)
    assert y_f32.shape == (batch, seq_len, hidden_dim)
    assert jnp.allclose(h_f32, h_ref, atol=1e-5, rtol=1e-5)
    assert jnp.allclose(y_f32, y_ref, atol=1e-5, rtol=1e-5)

    # bf16 MXU path (perf default for v6e/v7x): sanity check, loose tolerance.
    h_bf, y_bf = rnn_forward(sequence, params, compute_dtype=jnp.bfloat16)
    jax.block_until_ready((h_bf, y_bf))

    def rel_l2(a, b):
        a = a.astype(jnp.float32)
        return float(jnp.linalg.norm(a - b) / jnp.linalg.norm(b))

    assert rel_l2(h_bf, h_ref) < 3e-2
    assert rel_l2(y_bf, y_ref) < 3e-2

    print("KERNEL_OK")
</pallas_src>

<mosaic_0001>
module attributes {stable_mosaic.version = 11 : i64} {
  func.func @rnn_block_kernel(%arg0: i32, %arg1: i32, %arg2: memref<2x8x16xf32, #tpu.memory_space<vmem>>, %arg3: memref<16x128xf32, #tpu.memory_space<vmem>>, %arg4: memref<128x128xf32, #tpu.memory_space<vmem>>, %arg5: memref<128x128xf32, #tpu.memory_space<vmem>>, %arg6: memref<1x128xf32, #tpu.memory_space<vmem>>, %arg7: memref<1x128xf32, #tpu.memory_space<vmem>>, %arg8: memref<2x8x128xf32, #tpu.memory_space<vmem>>, %arg9: memref<2x8x128xf32, #tpu.memory_space<vmem>>, %arg10: memref<2x128xf32, #tpu.memory_space<vmem>>) attributes {dimension_semantics = [#tpu.dimension_semantics<parallel>, #tpu.dimension_semantics<arbitrary>], iteration_bounds = array<i64: 1, 1>, scalar_prefetch = 0 : i64, scratch_operands = 1 : i64, tpu.core_type = #tpu.core_type<tc>, window_params = [{transform_indices = @transform_0, window_bounds = array<i64: 2, 8, 16>}, {pipeline_mode = #tpu.pipeline_mode<synchronous>, transform_indices = @transform_1, window_bounds = array<i64: 16, 128>}, {pipeline_mode = #tpu.pipeline_mode<synchronous>, transform_indices = @transform_2, window_bounds = array<i64: 128, 128>}, {pipeline_mode = #tpu.pipeline_mode<synchronous>, transform_indices = @transform_3, window_bounds = array<i64: 128, 128>}, {pipeline_mode = #tpu.pipeline_mode<synchronous>, transform_indices = @transform_4, window_bounds = array<i64: 1, 128>}, {pipeline_mode = #tpu.pipeline_mode<synchronous>, transform_indices = @transform_5, window_bounds = array<i64: 1, 128>}, {transform_indices = @transform_6, window_bounds = array<i64: 2, 8, 128>}, {transform_indices = @transform_7, window_bounds = array<i64: 2, 8, 128>}]} {
    %c0_i32 = arith.constant 0 : i32
    %0 = arith.cmpi eq, %arg1, %c0_i32 : i32
    %1 = arith.extui %0 : i1 to i32
    %c0_i32_0 = arith.constant 0 : i32
    %2 = arith.cmpi ne, %1, %c0_i32_0 : i32
    scf.if %2 {
      %cst_57 = arith.constant 0.000000e+00 : f32
      %95 = vector.broadcast %cst_57 : f32 to vector<2x128xf32>
      %c0_58 = arith.constant 0 : index
      %c0_59 = arith.constant 0 : index
      %96 = vector.load %arg10[%c0_58, %c0_59] : memref<2x128xf32, #tpu.memory_space<vmem>>, vector<2x128xf32>
      tpu.vector_store %arg10[%c0_58, %c0_59], %95 {strides = array<i32>} : memref<2x128xf32, #tpu.memory_space<vmem>>, vector<2x128xf32>,
    } else {
    }
    %c0 = arith.constant 0 : index
    %c0_1 = arith.constant 0 : index
    %c0_2 = arith.constant 0 : index
    %3 = vector.load %arg2[%c0, %c0_1, %c0_2] : memref<2x8x16xf32, #tpu.memory_space<vmem>>, vector<2x8x16xf32>
    %4 = vector.shape_cast %3 : vector<2x8x16xf32> to vector<16x16xf32>
    %c0_3 = arith.constant 0 : index
    %c0_4 = arith.constant 0 : index
    %5 = vector.load %arg3[%c0_3, %c0_4] : memref<16x128xf32, #tpu.memory_space<vmem>>, vector<16x128xf32>
    %cst = arith.constant dense<0.000000e+00> : vector<16x128xf32>
    %6 = tpu.matmul %4, %5, %cst {dimension_numbers = #tpu.dot_dimension_numbers<[1], [0], [0], [1], [0, 0, 1, 1], [], []>} : vector<16x16xf32>, vector<16x128xf32>, vector<16x128xf32> -> vector<16x128xf32>
    %c0_5 = arith.constant 0 : index
    %c0_6 = arith.constant 0 : index
    %7 = vector.load %arg6[%c0_5, %c0_6] : memref<1x128xf32, #tpu.memory_space<vmem>>, vector<1x128xf32>
    %8 = vector.broadcast %7 : vector<1x128xf32> to vector<16x128xf32>
    %9 = arith.addf %6, %8 : vector<16x128xf32>
    %10 = vector.shape_cast %9 : vector<16x128xf32> to vector<2x8x128xf32>
    %c0_7 = arith.constant 0 : index
    %c0_8 = arith.constant 0 : index
    %11 = vector.load %arg4[%c0_7, %c0_8] : memref<128x128xf32, #tpu.memory_space<vmem>>, vector<128x128xf32>
    %c0_9 = arith.constant 0 : index
    %c0_10 = arith.constant 0 : index
    %12 = vector.load %arg10[%c0_9, %c0_10] : memref<2x128xf32, #tpu.memory_space<vmem>>, vector<2x128xf32>
    %cst_11 = arith.constant dense<0.000000e+00> : vector<2x128xf32>
    %13 = tpu.matmul %12, %11, %cst_11 {dimension_numbers = #tpu.dot_dimension_numbers<[1], [0], [0], [1], [0, 0, 1, 1], [], []>} : vector<2x128xf32>, vector<128x128xf32>, vector<2x128xf32> -> vector<2x128xf32>
    %14 = vector.extract_strided_slice %10 {offsets = [0, 0, 0], sizes = [2, 1, 128], strides = [1, 1, 1]} : vector<2x8x128xf32> to vector<2x1x128xf32>
    %15 = vector.shape_cast %14 : vector<2x1x128xf32> to vector<2x128xf32>
    %16 = arith.addf %15, %13 : vector<2x128xf32>
    %cst_12 = arith.constant 0.000000e+00 : f32
    %17 = vector.broadcast %cst_12 : f32 to vector<2x128xf32>
    %18 = arith.maximumf %16, %17 : vector<2x128xf32>
    %c0_13 = arith.constant 0 : index
    %c0_14 = arith.constant 0 : index
    %c0_15 = arith.constant 0 : index
    %19 = vector.load %arg8[%c0_13, %c0_14, %c0_15] : memref<2x8x128xf32, #tpu.memory_space<vmem>>, vector<2x1x128xf32>
    %20 = vector.shape_cast %19 : vector<2x1x128xf32> to vector<2x128xf32>
    %21 = vector.shape_cast %18 : vector<2x128xf32> to vector<2x1x128xf32>
    tpu.vector_store %arg8[%c0_13, %c0_14, %c0_15], %21 {strides = array<i32>} : memref<2x8x128xf32, #tpu.memory_space<vmem>>, vector<2x1x128xf32>,
    %cst_16 = arith.constant dense<0.000000e+00> : vector<2x128xf32>
    %22 = tpu.matmul %18, %11, %cst_16 {dimension_numbers = #tpu.dot_dimension_numbers<[1], [0], [0], [1], [0, 0, 1, 1], [], []>} : vector<2x128xf32>, vector<128x128xf32>, vector<2x128xf32> -> vector<2x128xf32>
    %23 = vector.extract_strided_slice %10 {offsets = [0, 1, 0], sizes = [2, 1, 128], strides = [1, 1, 1]} : vector<2x8x128xf32> to vector<2x1x128xf32>
    %24 = vector.shape_cast %23 : vector<2x1x128xf32> to vector<2x128xf32>
    %25 = arith.addf %24, %22 : vector<2x128xf32>
    %cst_17 = arith.constant 0.000000e+00 : f32
    %26 = vector.broadcast %cst_17 : f32 to vector<2x128xf32>
    %27 = arith.maximumf %25, %26 : vector<2x128xf32>
    %c0_18 = arith.constant 0 : index
    %c1 = arith.constant 1 : index
    %c0_19 = arith.constant 0 : index
    %28 = vector.load %arg8[%c0_18, %c1, %c0_19] : memref<2x8x128xf32, #tpu.memory_space<vmem>>, vector<2x1x128xf32>
    %29 = vector.shape_cast %28 : vector<2x1x128xf32> to vector<2x128xf32>
    %30 = vector.shape_cast %27 : vector<2x128xf32> to vector<2x1x128xf32>
    tpu.vector_store %arg8[%c0_18, %c1, %c0_19], %30 {strides = array<i32>} : memref<2x8x128xf32, #tpu.memory_space<vmem>>, vector<2x1x128xf32>,
    %cst_20 = arith.constant dense<0.000000e+00> : vector<2x128xf32>
    %31 = tpu.matmul %27, %11, %cst_20 {dimension_numbers = #tpu.dot_dimension_numbers<[1], [0], [0], [1], [0, 0, 1, 1], [], []>} : vector<2x128xf32>, vector<128x128xf32>, vector<2x128xf32> -> vector<2x128xf32>
    %32 = vector.extract_strided_slice %10 {offsets = [0, 2, 0], sizes = [2, 1, 128], strides = [1, 1, 1]} : vector<2x8x128xf32> to vector<2x1x128xf32>
    %33 = vector.shape_cast %32 : vector<2x1x128xf32> to vector<2x128xf32>
    %34 = arith.addf %33, %31 : vector<2x128xf32>
    %cst_21 = arith.constant 0.000000e+00 : f32
    %35 = vector.broadcast %cst_21 : f32 to vector<2x128xf32>
    %36 = arith.maximumf %34, %35 : vector<2x128xf32>
    %c0_22 = arith.constant 0 : index
    %c2 = arith.constant 2 : index
    %c0_23 = arith.constant 0 : index
    %37 = vector.load %arg8[%c0_22, %c2, %c0_23] : memref<2x8x128xf32, #tpu.memory_space<vmem>>, vector<2x1x128xf32>
    %38 = vector.shape_cast %37 : vector<2x1x128xf32> to vector<2x128xf32>
    %39 = vector.shape_cast %36 : vector<2x128xf32> to vector<2x1x128xf32>
    tpu.vector_store %arg8[%c0_22, %c2, %c0_23], %39 {strides = array<i32>} : memref<2x8x128xf32, #tpu.memory_space<vmem>>, vector<2x1x128xf32>,
    %cst_24 = arith.constant dense<0.000000e+00> : vector<2x128xf32>
    %40 = tpu.matmul %36, %11, %cst_24 {dimension_numbers = #tpu.dot_dimension_numbers<[1], [0], [0], [1], [0, 0, 1, 1], [], []>} : vector<2x128xf32>, vector<128x128xf32>, vector<2x128xf32> -> vector<2x128xf32>
    %41 = vector.extract_strided_slice %10 {offsets = [0, 3, 0], sizes = [2, 1, 128], strides = [1, 1, 1]} : vector<2x8x128xf32> to vector<2x1x128xf32>
    %42 = vector.shape_cast %41 : vector<2x1x128xf32> to vector<2x128xf32>
    %43 = arith.addf %42, %40 : vector<2x128xf32>
    %cst_25 = arith.constant 0.000000e+00 : f32
    %44 = vector.broadcast %cst_25 : f32 to vector<2x128xf32>
    %45 = arith.maximumf %43, %44 : vector<2x128xf32>
    %c0_26 = arith.constant 0 : index
    %c3 = arith.constant 3 : index
    %c0_27 = arith.constant 0 : index
    %46 = vector.load %arg8[%c0_26, %c3, %c0_27] : memref<2x8x128xf32, #tpu.memory_space<vmem>>, vector<2x1x128xf32>
    %47 = vector.shape_cast %46 : vector<2x1x128xf32> to vector<2x128xf32>
    %48 = vector.shape_cast %45 : vector<2x128xf32> to vector<2x1x128xf32>
    tpu.vector_store %arg8[%c0_26, %c3, %c0_27], %48 {strides = array<i32>} : memref<2x8x128xf32, #tpu.memory_space<vmem>>, vector<2x1x128xf32>,
    %cst_28 = arith.constant dense<0.000000e+00> : vector<2x128xf32>
    %49 = tpu.matmul %45, %11, %cst_28 {dimension_numbers = #tpu.dot_dimension_numbers<[1], [0], [0], [1], [0, 0, 1, 1], [], []>} : vector<2x128xf32>, vector<128x128xf32>, vector<2x128xf32> -> vector<2x128xf32>
    %50 = vector.extract_strided_slice %10 {offsets = [0, 4, 0], sizes = [2, 1, 128], strides = [1, 1, 1]} : vector<2x8x128xf32> to vector<2x1x128xf32>
    %51 = vector.shape_cast %50 : vector<2x1x128xf32> to vector<2x128xf32>
    %52 = arith.addf %51, %49 : vector<2x128xf32>
    %cst_29 = arith.constant 0.000000e+00 : f32
    %53 = vector.broadcast %cst_29 : f32 to vector<2x128xf32>
    %54 = arith.maximumf %52, %53 : vector<2x128xf32>
    %c0_30 = arith.constant 0 : index
    %c4 = arith.constant 4 : index
    %c0_31 = arith.constant 0 : index
    %55 = vector.load %arg8[%c0_30, %c4, %c0_31] : memref<2x8x128xf32, #tpu.memory_space<vmem>>, vector<2x1x128xf32>
    %56 = vector.shape_cast %55 : vector<2x1x128xf32> to vector<2x128xf32>
    %57 = vector.shape_cast %54 : vector<2x128xf32> to vector<2x1x128xf32>
    tpu.vector_store %arg8[%c0_30, %c4, %c0_31], %57 {strides = array<i32>} : memref<2x8x128xf32, #tpu.memory_space<vmem>>, vector<2x1x128xf32>,
    %cst_32 = arith.constant dense<0.000000e+00> : vector<2x128xf32>
    %58 = tpu.matmul %54, %11, %cst_32 {dimension_numbers = #tpu.dot_dimension_numbers<[1], [0], [0], [1], [0, 0, 1, 1], [], []>} : vector<2x128xf32>, vector<128x128xf32>, vector<2x128xf32> -> vector<2x128xf32>
    %59 = vector.extract_strided_slice %10 {offsets = [0, 5, 0], sizes = [2, 1, 128], strides = [1, 1, 1]} : vector<2x8x128xf32> to vector<2x1x128xf32>
    %60 = vector.shape_cast %59 : vector<2x1x128xf32> to vector<2x128xf32>
    %61 = arith.addf %60, %58 : vector<2x128xf32>
    %cst_33 = arith.constant 0.000000e+00 : f32
    %62 = vector.broadcast %cst_33 : f32 to vector<2x128xf32>
    %63 = arith.maximumf %61, %62 : vector<2x128xf32>
    %c0_34 = arith.constant 0 : index
    %c5 = arith.constant 5 : index
    %c0_35 = arith.constant 0 : index
    %64 = vector.load %arg8[%c0_34, %c5, %c0_35] : memref<2x8x128xf32, #tpu.memory_space<vmem>>, vector<2x1x128xf32>
    %65 = vector.shape_cast %64 : vector<2x1x128xf32> to vector<2x128xf32>
    %66 = vector.shape_cast %63 : vector<2x128xf32> to vector<2x1x128xf32>
    tpu.vector_store %arg8[%c0_34, %c5, %c0_35], %66 {strides = array<i32>} : memref<2x8x128xf32, #tpu.memory_space<vmem>>, vector<2x1x128xf32>,
    %cst_36 = arith.constant dense<0.000000e+00> : vector<2x128xf32>
    %67 = tpu.matmul %63, %11, %cst_36 {dimension_numbers = #tpu.dot_dimension_numbers<[1], [0], [0], [1], [0, 0, 1, 1], [], []>} : vector<2x128xf32>, vector<128x128xf32>, vector<2x128xf32> -> vector<2x128xf32>
    %68 = vector.extract_strided_slice %10 {offsets = [0, 6, 0], sizes = [2, 1, 128], strides = [1, 1, 1]} : vector<2x8x128xf32> to vector<2x1x128xf32>
    %69 = vector.shape_cast %68 : vector<2x1x128xf32> to vector<2x128xf32>
    %70 = arith.addf %69, %67 : vector<2x128xf32>
    %cst_37 = arith.constant 0.000000e+00 : f32
    %71 = vector.broadcast %cst_37 : f32 to vector<2x128xf32>
    %72 = arith.maximumf %70, %71 : vector<2x128xf32>
    %c0_38 = arith.constant 0 : index
    %c6 = arith.constant 6 : index
    %c0_39 = arith.constant 0 : index
    %73 = vector.load %arg8[%c0_38, %c6, %c0_39] : memref<2x8x128xf32, #tpu.memory_space<vmem>>, vector<2x1x128xf32>
    %74 = vector.shape_cast %73 : vector<2x1x128xf32> to vector<2x128xf32>
    %75 = vector.shape_cast %72 : vector<2x128xf32> to vector<2x1x128xf32>
    tpu.vector_store %arg8[%c0_38, %c6, %c0_39], %75 {strides = array<i32>} : memref<2x8x128xf32, #tpu.memory_space<vmem>>, vector<2x1x128xf32>,
    %cst_40 = arith.constant dense<0.000000e+00> : vector<2x128xf32>
    %76 = tpu.matmul %72, %11, %cst_40 {dimension_numbers = #tpu.dot_dimension_numbers<[1], [0], [0], [1], [0, 0, 1, 1], [], []>} : vector<2x128xf32>, vector<128x128xf32>, vector<2x128xf32> -> vector<2x128xf32>
    %77 = vector.extract_strided_slice %10 {offsets = [0, 7, 0], sizes = [2, 1, 128], strides = [1, 1, 1]} : vector<2x8x128xf32> to vector<2x1x128xf32>
    %78 = vector.shape_cast %77 : vector<2x1x128xf32> to vector<2x128xf32>
    %79 = arith.addf %78, %76 : vector<2x128xf32>
    %cst_41 = arith.constant 0.000000e+00 : f32
    %80 = vector.broadcast %cst_41 : f32 to vector<2x128xf32>
    %81 = arith.maximumf %79, %80 : vector<2x128xf32>
    %c0_42 = arith.constant 0 : index
    %c7 = arith.constant 7 : index
    %c0_43 = arith.constant 0 : index
    %82 = vector.load %arg8[%c0_42, %c7, %c0_43] : memref<2x8x128xf32, #tpu.memory_space<vmem>>, vector<2x1x128xf32>
    %83 = vector.shape_cast %82 : vector<2x1x128xf32> to vector<2x128xf32>
    %84 = vector.shape_cast %81 : vector<2x128xf32> to vector<2x1x128xf32>
    tpu.vector_store %arg8[%c0_42, %c7, %c0_43], %84 {strides = array<i32>} : memref<2x8x128xf32, #tpu.memory_space<vmem>>, vector<2x1x128xf32>,
    %c0_44 = arith.constant 0 : index
    %c0_45 = arith.constant 0 : index
    %85 = vector.load %arg10[%c0_44, %c0_45] : memref<2x128xf32, #tpu.memory_space<vmem>>, vector<2x128xf32>
    tpu.vector_store %arg10[%c0_44, %c0_45], %81 {strides = array<i32>} : memref<2x128xf32, #tpu.memory_space<vmem>>, vector<2x128xf32>,
    %c0_46 = arith.constant 0 : index
    %c0_47 = arith.constant 0 : index
    %c0_48 = arith.constant 0 : index
    %86 = vector.load %arg8[%c0_46, %c0_47, %c0_48] : memref<2x8x128xf32, #tpu.memory_space<vmem>>, vector<2x8x128xf32>
    %87 = vector.shape_cast %86 : vector<2x8x128xf32> to vector<16x128xf32>
    %c0_49 = arith.constant 0 : index
    %c0_50 = arith.constant 0 : index
    %88 = vector.load %arg5[%c0_49, %c0_50] : memref<128x128xf32, #tpu.memory_space<vmem>>, vector<128x128xf32>
    %cst_51 = arith.constant dense<0.000000e+00> : vector<16x128xf32>
    %89 = tpu.matmul %87, %88, %cst_51 {dimension_numbers = #tpu.dot_dimension_numbers<[1], [0], [0], [1], [0, 0, 1, 1], [], []>} : vector<16x128xf32>, vector<128x128xf32>, vector<16x128xf32> -> vector<16x128xf32>
    %c0_52 = arith.constant 0 : index
    %c0_53 = arith.constant 0 : index
    %90 = vector.load %arg7[%c0_52, %c0_53] : memref<1x128xf32, #tpu.memory_space<vmem>>, vector<1x128xf32>
    %91 = vector.broadcast %90 : vector<1x128xf32> to vector<16x128xf32>
    %92 = arith.addf %89, %91 : vector<16x128xf32>
    %93 = vector.shape_cast %92 : vector<16x128xf32> to vector<2x8x128xf32>
    %c0_54 = arith.constant 0 : index
    %c0_55 = arith.constant 0 : index
    %c0_56 = arith.constant 0 : index
    %94 = vector.load %arg9[%c0_54, %c0_55, %c0_56] : memref<2x8x128xf32, #tpu.memory_space<vmem>>, vector<2x8x128xf32>
    tpu.vector_store %arg9[%c0_54, %c0_55, %c0_56], %93 {strides = array<i32>} : memref<2x8x128xf32, #tpu.memory_space<vmem>>, vector<2x8x128xf32>,
    return
  }
  func.func @transform_0(%arg0: i32, %arg1: i32) -> (i32, i32, i32) {
    %c0_i32 = arith.constant 0 : i32
    %c0_i32_0 = arith.constant 0 : i32
    return %arg0, %arg1, %c0_i32 : i32, i32, i32
  }
  func.func @transform_1(%arg0: i32, %arg1: i32) -> (i32, i32) {
    %c0_i32 = arith.constant 0 : i32
    %c0_i32_0 = arith.constant 0 : i32
    %c0_i32_1 = arith.constant 0 : i32
    return %c0_i32, %c0_i32_0 : i32, i32
  }
  func.func @transform_2(%arg0: i32, %arg1: i32) -> (i32, i32) {
    %c0_i32 = arith.constant 0 : i32
    %c0_i32_0 = arith.constant 0 : i32
    %c0_i32_1 = arith.constant 0 : i32
    return %c0_i32, %c0_i32_0 : i32, i32
  }
  func.func @transform_3(%arg0: i32, %arg1: i32) -> (i32, i32) {
    %c0_i32 = arith.constant 0 : i32
    %c0_i32_0 = arith.constant 0 : i32
    %c0_i32_1 = arith.constant 0 : i32
    return %c0_i32, %c0_i32_0 : i32, i32
  }
  func.func @transform_4(%arg0: i32, %arg1: i32) -> (i32, i32) {
    %c0_i32 = arith.constant 0 : i32
    %c0_i32_0 = arith.constant 0 : i32
    %c0_i32_1 = arith.constant 0 : i32
    return %c0_i32, %c0_i32_0 : i32, i32
  }
  func.func @transform_5(%arg0: i32, %arg1: i32) -> (i32, i32) {
    %c0_i32 = arith.constant 0 : i32
    %c0_i32_0 = arith.constant 0 : i32
    %c0_i32_1 = arith.constant 0 : i32
    return %c0_i32, %c0_i32_0 : i32, i32
  }
  func.func @transform_6(%arg0: i32, %arg1: i32) -> (i32, i32, i32) {
    %c0_i32 = arith.constant 0 : i32
    %c0_i32_0 = arith.constant 0 : i32
    return %arg0, %arg1, %c0_i32 : i32, i32, i32
  }
  func.func @transform_7(%arg0: i32, %arg1: i32) -> (i32, i32, i32) {
    %c0_i32 = arith.constant 0 : i32
    %c0_i32_0 = arith.constant 0 : i32
    return %arg0, %arg1, %c0_i32 : i32, i32, i32
  }
}

module attributes {stable_mosaic.version = 11 : i64} {
  func.func @rnn_block_kernel(%arg0: i32, %arg1: i32, %arg2: memref<2x8x16xf32, #tpu.memory_space<vmem>>, %arg3: memref<16x128xf32, #tpu.memory_space<vmem>>, %arg4: memref<128x128xf32, #tpu.memory_space<vmem>>, %arg5: memref<128x128xf32, #tpu.memory_space<vmem>>, %arg6: memref<1x128xf32, #tpu.memory_space<vmem>>, %arg7: memref<1x128xf32, #tpu.memory_space<vmem>>, %arg8: memref<2x8x128xf32, #tpu.memory_space<vmem>>, %arg9: memref<2x8x128xf32, #tpu.memory_space<vmem>>, %arg10: memref<2x128xf32, #tpu.memory_space<vmem>>) attributes {dimension_semantics = [#tpu.dimension_semantics<parallel>, #tpu.dimension_semantics<arbitrary>], iteration_bounds = array<i64: 1, 1>, scalar_prefetch = 0 : i64, scratch_operands = 1 : i64, tpu.core_type = #tpu.core_type<tc>, window_params = [{transform_indices = @transform_0, window_bounds = array<i64: 2, 8, 16>}, {pipeline_mode = #tpu.pipeline_mode<synchronous>, transform_indices = @transform_1, window_bounds = array<i64: 16, 128>}, {pipeline_mode = #tpu.pipeline_mode<synchronous>, transform_indices = @transform_2, window_bounds = array<i64: 128, 128>}, {pipeline_mode = #tpu.pipeline_mode<synchronous>, transform_indices = @transform_3, window_bounds = array<i64: 128, 128>}, {pipeline_mode = #tpu.pipeline_mode<synchronous>, transform_indices = @transform_4, window_bounds = array<i64: 1, 128>}, {pipeline_mode = #tpu.pipeline_mode<synchronous>, transform_indices = @transform_5, window_bounds = array<i64: 1, 128>}, {transform_indices = @transform_6, window_bounds = array<i64: 2, 8, 128>}, {transform_indices = @transform_7, window_bounds = array<i64: 2, 8, 128>}]} {
    %c0_i32 = arith.constant 0 : i32
    %0 = arith.cmpi eq, %arg1, %c0_i32 : i32
    %1 = arith.extui %0 : i1 to i32
    %c0_i32_0 = arith.constant 0 : i32
    %2 = arith.cmpi ne, %1, %c0_i32_0 : i32
    scf.if %2 {
      %cst_57 = arith.constant 0.000000e+00 : f32
      %95 = vector.broadcast %cst_57 : f32 to vector<2x128xf32>
      %c0_58 = arith.constant 0 : index
      %c0_59 = arith.constant 0 : index
      %96 = vector.load %arg10[%c0_58, %c0_59] : memref<2x128xf32, #tpu.memory_space<vmem>>, vector<2x128xf32>
      tpu.vector_store %arg10[%c0_58, %c0_59], %95 {strides = array<i32>} : memref<2x128xf32, #tpu.memory_space<vmem>>, vector<2x128xf32>,
    } else {
    }
    %c0 = arith.constant 0 : index
    %c0_1 = arith.constant 0 : index
    %c0_2 = arith.constant 0 : index
    %3 = vector.load %arg2[%c0, %c0_1, %c0_2] : memref<2x8x16xf32, #tpu.memory_space<vmem>>, vector<2x8x16xf32>
    %4 = vector.shape_cast %3 : vector<2x8x16xf32> to vector<16x16xf32>
    %c0_3 = arith.constant 0 : index
    %c0_4 = arith.constant 0 : index
    %5 = vector.load %arg3[%c0_3, %c0_4] : memref<16x128xf32, #tpu.memory_space<vmem>>, vector<16x128xf32>
    %cst = arith.constant dense<0.000000e+00> : vector<16x128xf32>
    %6 = tpu.matmul %4, %5, %cst {dimension_numbers = #tpu.dot_dimension_numbers<[1], [0], [0], [1], [0, 0, 1, 1], [], []>} : vector<16x16xf32>, vector<16x128xf32>, vector<16x128xf32> -> vector<16x128xf32>
    %c0_5 = arith.constant 0 : index
    %c0_6 = arith.constant 0 : index
    %7 = vector.load %arg6[%c0_5, %c0_6] : memref<1x128xf32, #tpu.memory_space<vmem>>, vector<1x128xf32>
    %8 = vector.broadcast %7 : vector<1x128xf32> to vector<16x128xf32>
    %9 = arith.addf %6, %8 : vector<16x128xf32>
    %10 = vector.shape_cast %9 : vector<16x128xf32> to vector<2x8x128xf32>
    %c0_7 = arith.constant 0 : index
    %c0_8 = arith.constant 0 : index
    %11 = vector.load %arg4[%c0_7, %c0_8] : memref<128x128xf32, #tpu.memory_space<vmem>>, vector<128x128xf32>
    %c0_9 = arith.constant 0 : index
    %c0_10 = arith.constant 0 : index
    %12 = vector.load %arg10[%c0_9, %c0_10] : memref<2x128xf32, #tpu.memory_space<vmem>>, vector<2x128xf32>
    %cst_11 = arith.constant dense<0.000000e+00> : vector<2x128xf32>
    %13 = tpu.matmul %12, %11, %cst_11 {dimension_numbers = #tpu.dot_dimension_numbers<[1], [0], [0], [1], [0, 0, 1, 1], [], []>} : vector<2x128xf32>, vector<128x128xf32>, vector<2x128xf32> -> vector<2x128xf32>
    %14 = vector.extract_strided_slice %10 {offsets = [0, 0, 0], sizes = [2, 1, 128], strides = [1, 1, 1]} : vector<2x8x128xf32> to vector<2x1x128xf32>
    %15 = vector.shape_cast %14 : vector<2x1x128xf32> to vector<2x128xf32>
    %16 = arith.addf %15, %13 : vector<2x128xf32>
    %cst_12 = arith.constant 0.000000e+00 : f32
    %17 = vector.broadcast %cst_12 : f32 to vector<2x128xf32>
    %18 = arith.maximumf %16, %17 : vector<2x128xf32>
    %c0_13 = arith.constant 0 : index
    %c0_14 = arith.constant 0 : index
    %c0_15 = arith.constant 0 : index
    %19 = vector.load %arg8[%c0_13, %c0_14, %c0_15] : memref<2x8x128xf32, #tpu.memory_space<vmem>>, vector<2x1x128xf32>
    %20 = vector.shape_cast %19 : vector<2x1x128xf32> to vector<2x128xf32>
    %21 = vector.shape_cast %18 : vector<2x128xf32> to vector<2x1x128xf32>
    tpu.vector_store %arg8[%c0_13, %c0_14, %c0_15], %21 {strides = array<i32>} : memref<2x8x128xf32, #tpu.memory_space<vmem>>, vector<2x1x128xf32>,
    %cst_16 = arith.constant dense<0.000000e+00> : vector<2x128xf32>
    %22 = tpu.matmul %18, %11, %cst_16 {dimension_numbers = #tpu.dot_dimension_numbers<[1], [0], [0], [1], [0, 0, 1, 1], [], []>} : vector<2x128xf32>, vector<128x128xf32>, vector<2x128xf32> -> vector<2x128xf32>
    %23 = vector.extract_strided_slice %10 {offsets = [0, 1, 0], sizes = [2, 1, 128], strides = [1, 1, 1]} : vector<2x8x128xf32> to vector<2x1x128xf32>
    %24 = vector.shape_cast %23 : vector<2x1x128xf32> to vector<2x128xf32>
    %25 = arith.addf %24, %22 : vector<2x128xf32>
    %cst_17 = arith.constant 0.000000e+00 : f32
    %26 = vector.broadcast %cst_17 : f32 to vector<2x128xf32>
    %27 = arith.maximumf %25, %26 : vector<2x128xf32>
    %c0_18 = arith.constant 0 : index
    %c1 = arith.constant 1 : index
    %c0_19 = arith.constant 0 : index
    %28 = vector.load %arg8[%c0_18, %c1, %c0_19] : memref<2x8x128xf32, #tpu.memory_space<vmem>>, vector<2x1x128xf32>
    %29 = vector.shape_cast %28 : vector<2x1x128xf32> to vector<2x128xf32>
    %30 = vector.shape_cast %27 : vector<2x128xf32> to vector<2x1x128xf32>
    tpu.vector_store %arg8[%c0_18, %c1, %c0_19], %30 {strides = array<i32>} : memref<2x8x128xf32, #tpu.memory_space<vmem>>, vector<2x1x128xf32>,
    %cst_20 = arith.constant dense<0.000000e+00> : vector<2x128xf32>
    %31 = tpu.matmul %27, %11, %cst_20 {dimension_numbers = #tpu.dot_dimension_numbers<[1], [0], [0], [1], [0, 0, 1, 1], [], []>} : vector<2x128xf32>, vector<128x128xf32>, vector<2x128xf32> -> vector<2x128xf32>
    %32 = vector.extract_strided_slice %10 {offsets = [0, 2, 0], sizes = [2, 1, 128], strides = [1, 1, 1]} : vector<2x8x128xf32> to vector<2x1x128xf32>
    %33 = vector.shape_cast %32 : vector<2x1x128xf32> to vector<2x128xf32>
    %34 = arith.addf %33, %31 : vector<2x128xf32>
    %cst_21 = arith.constant 0.000000e+00 : f32
    %35 = vector.broadcast %cst_21 : f32 to vector<2x128xf32>
    %36 = arith.maximumf %34, %35 : vector<2x128xf32>
    %c0_22 = arith.constant 0 : index
    %c2 = arith.constant 2 : index
    %c0_23 = arith.constant 0 : index
    %37 = vector.load %arg8[%c0_22, %c2, %c0_23] : memref<2x8x128xf32, #tpu.memory_space<vmem>>, vector<2x1x128xf32>
    %38 = vector.shape_cast %37 : vector<2x1x128xf32> to vector<2x128xf32>
    %39 = vector.shape_cast %36 : vector<2x128xf32> to vector<2x1x128xf32>
    tpu.vector_store %arg8[%c0_22, %c2, %c0_23], %39 {strides = array<i32>} : memref<2x8x128xf32, #tpu.memory_space<vmem>>, vector<2x1x128xf32>,
    %cst_24 = arith.constant dense<0.000000e+00> : vector<2x128xf32>
    %40 = tpu.matmul %36, %11, %cst_24 {dimension_numbers = #tpu.dot_dimension_numbers<[1], [0], [0], [1], [0, 0, 1, 1], [], []>} : vector<2x128xf32>, vector<128x128xf32>, vector<2x128xf32> -> vector<2x128xf32>
    %41 = vector.extract_strided_slice %10 {offsets = [0, 3, 0], sizes = [2, 1, 128], strides = [1, 1, 1]} : vector<2x8x128xf32> to vector<2x1x128xf32>
    %42 = vector.shape_cast %41 : vector<2x1x128xf32> to vector<2x128xf32>
    %43 = arith.addf %42, %40 : vector<2x128xf32>
    %cst_25 = arith.constant 0.000000e+00 : f32
    %44 = vector.broadcast %cst_25 : f32 to vector<2x128xf32>
    %45 = arith.maximumf %43, %44 : vector<2x128xf32>
    %c0_26 = arith.constant 0 : index
    %c3 = arith.constant 3 : index
    %c0_27 = arith.constant 0 : index
    %46 = vector.load %arg8[%c0_26, %c3, %c0_27] : memref<2x8x128xf32, #tpu.memory_space<vmem>>, vector<2x1x128xf32>
    %47 = vector.shape_cast %46 : vector<2x1x128xf32> to vector<2x128xf32>
    %48 = vector.shape_cast %45 : vector<2x128xf32> to vector<2x1x128xf32>
    tpu.vector_store %arg8[%c0_26, %c3, %c0_27], %48 {strides = array<i32>} : memref<2x8x128xf32, #tpu.memory_space<vmem>>, vector<2x1x128xf32>,
    %cst_28 = arith.constant dense<0.000000e+00> : vector<2x128xf32>
    %49 = tpu.matmul %45, %11, %cst_28 {dimension_numbers = #tpu.dot_dimension_numbers<[1], [0], [0], [1], [0, 0, 1, 1], [], []>} : vector<2x128xf32>, vector<128x128xf32>, vector<2x128xf32> -> vector<2x128xf32>
    %50 = vector.extract_strided_slice %10 {offsets = [0, 4, 0], sizes = [2, 1, 128], strides = [1, 1, 1]} : vector<2x8x128xf32> to vector<2x1x128xf32>
    %51 = vector.shape_cast %50 : vector<2x1x128xf32> to vector<2x128xf32>
    %52 = arith.addf %51, %49 : vector<2x128xf32>
    %cst_29 = arith.constant 0.000000e+00 : f32
    %53 = vector.broadcast %cst_29 : f32 to vector<2x128xf32>
    %54 = arith.maximumf %52, %53 : vector<2x128xf32>
    %c0_30 = arith.constant 0 : index
    %c4 = arith.constant 4 : index
    %c0_31 = arith.constant 0 : index
    %55 = vector.load %arg8[%c0_30, %c4, %c0_31] : memref<2x8x128xf32, #tpu.memory_space<vmem>>, vector<2x1x128xf32>
    %56 = vector.shape_cast %55 : vector<2x1x128xf32> to vector<2x128xf32>
    %57 = vector.shape_cast %54 : vector<2x128xf32> to vector<2x1x128xf32>
    tpu.vector_store %arg8[%c0_30, %c4, %c0_31], %57 {strides = array<i32>} : memref<2x8x128xf32, #tpu.memory_space<vmem>>, vector<2x1x128xf32>,
    %cst_32 = arith.constant dense<0.000000e+00> : vector<2x128xf32>
    %58 = tpu.matmul %54, %11, %cst_32 {dimension_numbers = #tpu.dot_dimension_numbers<[1], [0], [0], [1], [0, 0, 1, 1], [], []>} : vector<2x128xf32>, vector<128x128xf32>, vector<2x128xf32> -> vector<2x128xf32>
    %59 = vector.extract_strided_slice %10 {offsets = [0, 5, 0], sizes = [2, 1, 128], strides = [1, 1, 1]} : vector<2x8x128xf32> to vector<2x1x128xf32>
    %60 = vector.shape_cast %59 : vector<2x1x128xf32> to vector<2x128xf32>
    %61 = arith.addf %60, %58 : vector<2x128xf32>
    %cst_33 = arith.constant 0.000000e+00 : f32
    %62 = vector.broadcast %cst_33 : f32 to vector<2x128xf32>
    %63 = arith.maximumf %61, %62 : vector<2x128xf32>
    %c0_34 = arith.constant 0 : index
    %c5 = arith.constant 5 : index
    %c0_35 = arith.constant 0 : index
    %64 = vector.load %arg8[%c0_34, %c5, %c0_35] : memref<2x8x128xf32, #tpu.memory_space<vmem>>, vector<2x1x128xf32>
    %65 = vector.shape_cast %64 : vector<2x1x128xf32> to vector<2x128xf32>
    %66 = vector.shape_cast %63 : vector<2x128xf32> to vector<2x1x128xf32>
    tpu.vector_store %arg8[%c0_34, %c5, %c0_35], %66 {strides = array<i32>} : memref<2x8x128xf32, #tpu.memory_space<vmem>>, vector<2x1x128xf32>,
    %cst_36 = arith.constant dense<0.000000e+00> : vector<2x128xf32>
    %67 = tpu.matmul %63, %11, %cst_36 {dimension_numbers = #tpu.dot_dimension_numbers<[1], [0], [0], [1], [0, 0, 1, 1], [], []>} : vector<2x128xf32>, vector<128x128xf32>, vector<2x128xf32> -> vector<2x128xf32>
    %68 = vector.extract_strided_slice %10 {offsets = [0, 6, 0], sizes = [2, 1, 128], strides = [1, 1, 1]} : vector<2x8x128xf32> to vector<2x1x128xf32>
    %69 = vector.shape_cast %68 : vector<2x1x128xf32> to vector<2x128xf32>
    %70 = arith.addf %69, %67 : vector<2x128xf32>
    %cst_37 = arith.constant 0.000000e+00 : f32
    %71 = vector.broadcast %cst_37 : f32 to vector<2x128xf32>
    %72 = arith.maximumf %70, %71 : vector<2x128xf32>
    %c0_38 = arith.constant 0 : index
    %c6 = arith.constant 6 : index
    %c0_39 = arith.constant 0 : index
    %73 = vector.load %arg8[%c0_38, %c6, %c0_39] : memref<2x8x128xf32, #tpu.memory_space<vmem>>, vector<2x1x128xf32>
    %74 = vector.shape_cast %73 : vector<2x1x128xf32> to vector<2x128xf32>
    %75 = vector.shape_cast %72 : vector<2x128xf32> to vector<2x1x128xf32>
    tpu.vector_store %arg8[%c0_38, %c6, %c0_39], %75 {strides = array<i32>} : memref<2x8x128xf32, #tpu.memory_space<vmem>>, vector<2x1x128xf32>,
    %cst_40 = arith.constant dense<0.000000e+00> : vector<2x128xf32>
    %76 = tpu.matmul %72, %11, %cst_40 {dimension_numbers = #tpu.dot_dimension_numbers<[1], [0], [0], [1], [0, 0, 1, 1], [], []>} : vector<2x128xf32>, vector<128x128xf32>, vector<2x128xf32> -> vector<2x128xf32>
    %77 = vector.extract_strided_slice %10 {offsets = [0, 7, 0], sizes = [2, 1, 128], strides = [1, 1, 1]} : vector<2x8x128xf32> to vector<2x1x128xf32>
    %78 = vector.shape_cast %77 : vector<2x1x128xf32> to vector<2x128xf32>
    %79 = arith.addf %78, %76 : vector<2x128xf32>
    %cst_41 = arith.constant 0.000000e+00 : f32
    %80 = vector.broadcast %cst_41 : f32 to vector<2x128xf32>
    %81 = arith.maximumf %79, %80 : vector<2x128xf32>
    %c0_42 = arith.constant 0 : index
    %c7 = arith.constant 7 : index
    %c0_43 = arith.constant 0 : index
    %82 = vector.load %arg8[%c0_42, %c7, %c0_43] : memref<2x8x128xf32, #tpu.memory_space<vmem>>, vector<2x1x128xf32>
    %83 = vector.shape_cast %82 : vector<2x1x128xf32> to vector<2x128xf32>
    %84 = vector.shape_cast %81 : vector<2x128xf32> to vector<2x1x128xf32>
    tpu.vector_store %arg8[%c0_42, %c7, %c0_43], %84 {strides = array<i32>} : memref<2x8x128xf32, #tpu.memory_space<vmem>>, vector<2x1x128xf32>,
    %c0_44 = arith.constant 0 : index
    %c0_45 = arith.constant 0 : index
    %85 = vector.load %arg10[%c0_44, %c0_45] : memref<2x128xf32, #tpu.memory_space<vmem>>, vector<2x128xf32>
    tpu.vector_store %arg10[%c0_44, %c0_45], %81 {strides = array<i32>} : memref<2x128xf32, #tpu.memory_space<vmem>>, vector<2x128xf32>,
    %c0_46 = arith.constant 0 : index
    %c0_47 = arith.constant 0 : index
    %c0_48 = arith.constant 0 : index
    %86 = vector.load %arg8[%c0_46, %c0_47, %c0_48] : memref<2x8x128xf32, #tpu.memory_space<vmem>>, vector<2x8x128xf32>
    %87 = vector.shape_cast %86 : vector<2x8x128xf32> to vector<16x128xf32>
    %c0_49 = arith.constant 0 : index
    %c0_50 = arith.constant 0 : index
    %88 = vector.load %arg5[%c0_49, %c0_50] : memref<128x128xf32, #tpu.memory_space<vmem>>, vector<128x128xf32>
    %cst_51 = arith.constant dense<0.000000e+00> : vector<16x128xf32>
    %89 = tpu.matmul %87, %88, %cst_51 {dimension_numbers = #tpu.dot_dimension_numbers<[1], [0], [0], [1], [0, 0, 1, 1], [], []>} : vector<16x128xf32>, vector<128x128xf32>, vector<16x128xf32> -> vector<16x128xf32>
    %c0_52 = arith.constant 0 : index
    %c0_53 = arith.constant 0 : index
    %90 = vector.load %arg7[%c0_52, %c0_53] : memref<1x128xf32, #tpu.memory_space<vmem>>, vector<1x128xf32>
    %91 = vector.broadcast %90 : vector<1x128xf32> to vector<16x128xf32>
    %92 = arith.addf %89, %91 : vector<16x128xf32>
    %93 = vector.shape_cast %92 : vector<16x128xf32> to vector<2x8x128xf32>
    %c0_54 = arith.constant 0 : index
    %c0_55 = arith.constant 0 : index
    %c0_56 = arith.constant 0 : index
    %94 = vector.load %arg9[%c0_54, %c0_55, %c0_56] : memref<2x8x128xf32, #tpu.memory_space<vmem>>, vector<2x8x128xf32>
    tpu.vector_store %arg9[%c0_54, %c0_55, %c0_56], %93 {strides = array<i32>} : memref<2x8x128xf32, #tpu.memory_space<vmem>>, vector<2x8x128xf32>,
    return
  }
  func.func @transform_0(%arg0: i32, %arg1: i32) -> (i32, i32, i32) {
    %c0_i32 = arith.constant 0 : i32
    %c0_i32_0 = arith.constant 0 : i32
    return %arg0, %arg1, %c0_i32 : i32, i32, i32
  }
  func.func @transform_1(%arg0: i32, %arg1: i32) -> (i32, i32) {
    %c0_i32 = arith.constant 0 : i32
    %c0_i32_0 = arith.constant 0 : i32
    %c0_i32_1 = arith.constant 0 : i32
    return %c0_i32, %c0_i32_0 : i32, i32
  }
  func.func @transform_2(%arg0: i32, %arg1: i32) -> (i32, i32) {
    %c0_i32 = arith.constant 0 : i32
    %c0_i32_0 = arith.constant 0 : i32
    %c0_i32_1 = arith.constant 0 : i32
    return %c0_i32, %c0_i32_0 : i32, i32
  }
  func.func @transform_3(%arg0: i32, %arg1: i32) -> (i32, i32) {
    %c0_i32 = arith.constant 0 : i32
    %c0_i32_0 = arith.constant 0 : i32
    %c0_i32_1 = arith.constant 0 : i32
    return %c0_i32, %c0_i32_0 : i32, i32
  }
  func.func @transform_4(%arg0: i32, %arg1: i32) -> (i32, i32) {
    %c0_i32 = arith.constant 0 : i32
    %c0_i32_0 = arith.constant 0 : i32
    %c0_i32_1 = arith.constant 0 : i32
    return %c0_i32, %c0_i32_0 : i32, i32
  }
  func.func @transform_5(%arg0: i32, %arg1: i32) -> (i32, i32) {
    %c0_i32 = arith.constant 0 : i32
    %c0_i32_0 = arith.constant 0 : i32
    %c0_i32_1 = arith.constant 0 : i32
    return %c0_i32, %c0_i32_0 : i32, i32
  }
  func.func @transform_6(%arg0: i32, %arg1: i32) -> (i32, i32, i32) {
    %c0_i32 = arith.constant 0 : i32
    %c0_i32_0 = arith.constant 0 : i32
    return %arg0, %arg1, %c0_i32 : i32, i32, i32
  }
  func.func @transform_7(%arg0: i32, %arg1: i32) -> (i32, i32, i32) {
    %c0_i32 = arith.constant 0 : i32
    %c0_i32_0 = arith.constant 0 : i32
    return %arg0, %arg1, %c0_i32 : i32, i32, i32
  }
}

</mosaic_0001>

<llo_original>
// kernel: tpu_custom_call.1
$region0: #{tpu_custom_call.1}
  #allocation0 [shape = 'u32[]', space=smem, size = 0x4, offset = 0x4, fixed_abs, tag = 'smem constant byte address 0x4 - core index']
  #allocation1 [shape = 'u32[72,128]{1,0:T(1,128)}', space=vmem, size = 0x9000, scoped, tag = 'internal scratch']
  #allocation2 [shape = 'f32[2,128]{1,0:T(2,128)}', space=vmem, size = 0x400, scoped, tag = 'scratch operand']
  %s0 = inlined_call_operand.hbm [shape: f32[2,8,16], index: 0, kind: input, shape index: {}]
  %s1 = inlined_call_operand.hbm [shape: f32[16,128], index: 1, kind: input, shape index: {}]
  %s2 = inlined_call_operand.hbm [shape: f32[128,128], index: 2, kind: input, shape index: {}]
  %s3 = inlined_call_operand.hbm [shape: f32[128,128], index: 3, kind: input, shape index: {}]
  %s4 = inlined_call_operand.vmem [shape: f32[1,128], index: 4, kind: input, shape index: {}]
  %s5 = inlined_call_operand.vmem [shape: f32[1,128], index: 5, kind: input, shape index: {}]
  %s6 = inlined_call_operand.hbm [shape: f32[2,8,128], index: 6, kind: output, shape index: {0}]
  %s7 = inlined_call_operand.hbm [shape: f32[2,8,128], index: 7, kind: output, shape index: {1}]
  %8 = xla_tuple %s6, %s7
  %s9 = sld [smem:[#allocation0]]
  $region62: #{tpu_custom_call.1} parent=0
    _
  %s11 = ssub.s32 1, %s9
  %s12 = scalar_select 0, %s11, %s9
  $region1: #{tpu_custom_call.1} parent=0
    #allocation3 [shape = 'u8[8192]{0}', space=vmem, size = 0x2000, scoped, tag = 'input window, operand 0, single buffered']
    #allocation4 [shape = 's32[1]{0}', space=sflag, size = 0x4, scoped, tag = 'scoped memory for tpu_custom_call.1']
    #allocation5 [shape = 's32[1]{0}', space=sflag, size = 0x4, scoped, tag = 'scoped memory for tpu_custom_call.1']
    #allocation6 [shape = 'u8[8192]{0}', space=vmem, size = 0x2000, scoped, tag = 'input window, operand 1, single buffered']
    #allocation7 [shape = 's32[1]{0}', space=sflag, size = 0x4, scoped, tag = 'scoped memory for tpu_custom_call.1']
    #allocation8 [shape = 'u8[65536]{0}', space=vmem, size = 0x10000, scoped, tag = 'input window, operand 2, single buffered']
    #allocation9 [shape = 'u8[65536]{0}', space=vmem, size = 0x10000, scoped, tag = 'input window, operand 3, single buffered']
    #allocation10 [shape = 's32[1]{0}', space=sflag, size = 0x4, scoped, tag = 'scoped memory for tpu_custom_call.1']
    #allocation11 [shape = 'u8[8192]{0}', space=vmem, size = 0x2000, scoped, tag = 'output window, operand 0, single buffered']
    #allocation12 [shape = 'u8[8192]{0}', space=vmem, size = 0x2000, scoped, tag = 'output window, operand 1, single buffered']
    #allocation13 [shape = 's32[1]{0}', space=sflag, size = 0x4, scoped, tag = 'scoped memory for tpu_custom_call.1']
    %13 = vsyncpa [#allocation4], 0
    %14 = vsyncpa [#allocation7], 0
    %15 = vsyncpa [#allocation10], 0
    %16 = vsyncpa [#allocation5], 0
    %17 = vsyncpa [#allocation13], 0
    // Predicated region
    $region2: #{tpu_custom_call.1} parent=1 // pred_check
      _
    $region3: #{tpu_custom_call.1} parent=1 // pred_check_branch
      %19 = sbr.rel (0) target = $region5
    $region4: #{tpu_custom_call.1} parent=1 // pred_region
      %21 = vsyncadd [#allocation4], 0
      %s22 = sshll.u32 %s0, 4
      %s23 = int_to_ptr.hbm [resolvable:$true] %s22
      %s24 = sshll.u32 [#allocation3], 4
      %s25 = int_to_ptr.vmem [resolvable:$true] %s24
      %30 = dma.hbm_to_vmem [thread:$0]  %s23, 256, %s25, [#allocation4], 128, 128, 8
    $region5: #{tpu_custom_call.1} parent=1 // pred_fallthru
      _
    // Predicated region
    $region6: #{tpu_custom_call.1} parent=1 // pred_check
      _
    $region7: #{tpu_custom_call.1} parent=1 // pred_check_branch
      %32 = sbr.rel (0) target = $region9
    $region8: #{tpu_custom_call.1} parent=1 // pred_region
      %34 = vsyncadd [#allocation7], 0
      %s35 = sshll.u32 %s1, 4
      %s36 = int_to_ptr.hbm [resolvable:$true] %s35
      %s37 = sshll.u32 [#allocation6], 4
      %s38 = int_to_ptr.vmem [resolvable:$true] %s37
      %43 = dma.hbm_to_vmem [thread:$0]  %s36, 256, %s38, [#allocation7], 128, 128, 8
    $region9: #{tpu_custom_call.1} parent=1 // pred_fallthru
      _
    // Predicated region
    $region10: #{tpu_custom_call.1} parent=1 // pred_check
      _
    $region11: #{tpu_custom_call.1} parent=1 // pred_check_branch
      %45 = sbr.rel (0) target = $region13
    $region12: #{tpu_custom_call.1} parent=1 // pred_region
      %47 = vsyncadd [#allocation7], 0
      %s48 = sshll.u32 %s2, 4
      %s49 = int_to_ptr.hbm [resolvable:$true] %s48
      %s50 = sshll.u32 [#allocation8], 4
      %s51 = int_to_ptr.vmem [resolvable:$true] %s50
      %56 = dma.hbm_to_vmem [thread:$0]  %s49, 2048, %s51, [#allocation7], 128, 128, 8
    $region13: #{tpu_custom_call.1} parent=1 // pred_fallthru
      _
    // Predicated region
    $region14: #{tpu_custom_call.1} parent=1 // pred_check
      _
    $region15: #{tpu_custom_call.1} parent=1 // pred_check_branch
      %58 = sbr.rel (0) target = $region17
    $region16: #{tpu_custom_call.1} parent=1 // pred_region
      %60 = vsyncadd [#allocation10], 0
      %s61 = sshll.u32 %s3, 4
      %s62 = int_to_ptr.hbm [resolvable:$true] %s61
      %s63 = sshll.u32 [#allocation9], 4
      %s64 = int_to_ptr.vmem [resolvable:$true] %s63
      %69 = dma.hbm_to_vmem [thread:$0]  %s62, 2048, %s64, [#allocation10], 128, 128, 8
    $region17: #{tpu_custom_call.1} parent=1 // pred_fallthru
      _
    // Predicated region
    $region18: #{tpu_custom_call.1} parent=1 // pred_check
      _
    $region19: #{tpu_custom_call.1} parent=1 // pred_check_branch
      %71 = sbr.rel (0) target = $region21
    $region20: #{tpu_custom_call.1} parent=1 // pred_region
      _
    $region21: #{tpu_custom_call.1} parent=1 // pred_fallthru
      _
    // Predicated region
    $region22: #{tpu_custom_call.1} parent=1 // pred_check
      _
    $region23: #{tpu_custom_call.1} parent=1 // pred_check_branch
      %73 = sbr.rel (0) target = $region25
    $region24: #{tpu_custom_call.1} parent=1 // pred_region
      _
    $region25: #{tpu_custom_call.1} parent=1 // pred_fallthru
      _
    // Predicated region
    $region26: #{tpu_custom_call.1} parent=1 // pred_check
      _
    $region27: #{tpu_custom_call.1} parent=1 // pred_check_branch
      %75 = sbr.rel (0) target = $region29
    $region28: #{tpu_custom_call.1} parent=1 // pred_region
      %77 = dma.done [#allocation4], 256
    $region29: #{tpu_custom_call.1} parent=1 // pred_fallthru
      _
    // Predicated region
    $region30: #{tpu_custom_call.1} parent=1 // pred_check
      _
    $region31: #{tpu_custom_call.1} parent=1 // pred_check_branch
      %79 = sbr.rel (0) target = $region33
    $region32: #{tpu_custom_call.1} parent=1 // pred_region
      %81 = dma.done [#allocation7], 256
    $region33: #{tpu_custom_call.1} parent=1 // pred_fallthru
      _
    // Predicated region
    $region34: #{tpu_custom_call.1} parent=1 // pred_check
      _
    $region35: #{tpu_custom_call.1} parent=1 // pred_check_branch
      %83 = sbr.rel (0) target = $region37
    $region36: #{tpu_custom_call.1} parent=1 // pred_region
      %85 = dma.done [#allocation7], 2048
    $region37: #{tpu_custom_call.1} parent=1 // pred_fallthru
      _
    // Predicated region
    $region38: #{tpu_custom_call.1} parent=1 // pred_check
      _
    $region39: #{tpu_custom_call.1} parent=1 // pred_check_branch
      %87 = sbr.rel (0) target = $region41
    $region40: #{tpu_custom_call.1} parent=1 // pred_region
      %89 = dma.done [#allocation10], 2048
    $region41: #{tpu_custom_call.1} parent=1 // pred_fallthru
      _
    %p90 = scmp.eq.s32.totalorder 0, 0
    // Predicated region
    $region42: #{tpu_custom_call.1} parent=1 // pred_check
      %p91 = pneg %p90
    $region43: #{tpu_custom_call.1} parent=1 // pred_check_branch
      %93 = sbr.rel (%p91) target = $region45
    $region44: #{tpu_custom_call.1} parent=1 // pred_region
      %94 = vst [vmem:[#allocation2] sm:$0x3] 0.0
    $region45: #{tpu_custom_call.1} parent=1 // pred_fallthru
      _
    %v95 = vld [vmem:[#allocation3] sm:$0xff]
    %v96 = vld [vmem:[#allocation3 + $0x8] sm:$0xff]
    %v97 = vld [vmem:[#allocation6] sm:$0xff]
    %v98 = vld [vmem:[#allocation6 + $0x8] sm:$0xff]
    %v99 = vld [vmem:[%s4] sm:$0x1]
    %v101 = vperm.slane %v99, 0
    %vm103 = vcmask 130048
    %v105 = vsel %vm103, %v95, 0
    %v108 = vsel %vm103, %v96, 0
    %110 = vmatpush.msra.mxu0 0.0
    %111 = vmatpush.msra.mxu0 0.0
    %112 = vmatpush.msra.mxu0 0.0
    %113 = vmatpush.msra.mxu0 0.0
    %114 = vmatpush.msra.mxu0 0.0
    %115 = vmatpush.msra.mxu0 0.0
    %116 = vmatpush.msra.mxu0 0.0
    %117 = vmatpush.msra.mxu0 0.0
    %118 = vmatpush.msra.mxu0 0.0
    %119 = vmatpush.msra.mxu0 0.0
    %120 = vmatpush.msra.mxu0 0.0
    %121 = vmatpush.msra.mxu0 0.0
    %122 = vmatpush.msra.mxu0 0.0
    %123 = vmatpush.msra.mxu0 0.0
    %124 = vmatpush.msra.mxu0 %v98
    %125 = vmatpush.msra.mxu0 %v97
    %126 = vmatmul.f32.gmra.mxu0 %v105
    %v127 = vpop.f32.mrf.mxu0
    %v128 = vadd.f32 %v101, %v127
    %129 = vmatmul.f32.gmra.mxu0 %v108
    %v130 = vpop.f32.mrf.mxu0
    %v131 = vadd.f32 %v101, %v130
    %132 = vdwg.mxu0
    %v133 = vld [vmem:[#allocation8] sm:$0xff]
    %v134 = vld [vmem:[#allocation8 + $0x8] sm:$0xff]
    %v135 = vld [vmem:[#allocation8 + $0x10] sm:$0xff]
    %v136 = vld [vmem:[#allocation8 + $0x18] sm:$0xff]
    %v137 = vld [vmem:[#allocation8 + $0x20] sm:$0xff]
    %v138 = vld [vmem:[#allocation8 + $0x28] sm:$0xff]
    %v139 = vld [vmem:[#allocation8 + $0x30] sm:$0xff]
    %v140 = vld [vmem:[#allocation8 + $0x38] sm:$0xff]
    %v141 = vld [vmem:[#allocation8 + $0x40] sm:$0xff]
    %v142 = vld [vmem:[#allocation8 + $0x48] sm:$0xff]
    %v143 = vld [vmem:[#allocation8 + $0x50] sm:$0xff]
    %v144 = vld [vmem:[#allocation8 + $0x58] sm:$0xff]
    %v145 = vld [vmem:[#allocation8 + $0x60] sm:$0xff]
    %v146 = vld [vmem:[#allocation8 + $0x68] sm:$0xff]
    %v147 = vld [vmem:[#allocation8 + $0x70] sm:$0xff]
    %v148 = vld [vmem:[#allocation8 + $0x78] sm:$0xff]
    %v149 = vld [vmem:[#allocation2] sm:$0x3]
    %150 = vmatpush.msra.mxu0 %v148
    %151 = vmatpush.msra.mxu0 %v147
    %152 = vmatpush.msra.mxu0 %v146
    %153 = vmatpush.msra.mxu0 %v145
    %154 = vmatpush.msra.mxu0 %v144
    %155 = vmatpush.msra.mxu0 %v143
    %156 = vmatpush.msra.mxu0 %v142
    %157 = vmatpush.msra.mxu0 %v141
    %158 = vmatpush.msra.mxu0 %v140
    %159 = vmatpush.msra.mxu0 %v139
    %160 = vmatpush.msra.mxu0 %v138
    %161 = vmatpush.msra.mxu0 %v137
    %162 = vmatpush.msra.mxu0 %v136
    %163 = vmatpush.msra.mxu0 %v135
    %164 = vmatpush.msra.mxu0 %v134
    %165 = vmatpush.msra.mxu0 %v133
    %166 = vmatmul.f32.gmra.mxu0 %v149
    %v167 = vpop.f32.mrf.mxu0
    %v168 = vadd.f32 0.0, %v167
    %169 = vdwg.mxu0
    %v171 = vrot.slane %v168, 1
    %v174 = vadd.f32 %v128, %v168
    %v175 = vadd.f32 %v131, %v171
    %v176 = vmax.f32 %v174, 0.0
    %v177 = vmax.f32 %v175, 0.0
    %178 = vst [vmem:[#allocation11] sm:$0x1] %v176
    %179 = vst [vmem:[#allocation11 + $0x8] sm:$0x1] %v177
    %v182 = vrot.slane %v177, 7
    %vm183 = vcmask 1041409
    %v184 = vsel %vm183, %v182, %v176
    %186 = vmatpush.msra.mxu0 %v148
    %187 = vmatpush.msra.mxu0 %v147
    %188 = vmatpush.msra.mxu0 %v146
    %189 = vmatpush.msra.mxu0 %v145
    %190 = vmatpush.msra.mxu0 %v144
    %191 = vmatpush.msra.mxu0 %v143
    %192 = vmatpush.msra.mxu0 %v142
    %193 = vmatpush.msra.mxu0 %v141
    %194 = vmatpush.msra.mxu0 %v140
    %195 = vmatpush.msra.mxu0 %v139
    %196 = vmatpush.msra.mxu0 %v138
    %197 = vmatpush.msra.mxu0 %v137
    %198 = vmatpush.msra.mxu0 %v136
    %199 = vmatpush.msra.mxu0 %v135
    %200 = vmatpush.msra.mxu0 %v134
    %201 = vmatpush.msra.mxu0 %v133
    %202 = vmatmul.f32.gmra.mxu0 %v184
    %v203 = vpop.f32.mrf.mxu0
    %v204 = vadd.f32 0.0, %v203
    %205 = vdwg.mxu0
    %v207 = vrot.slane %v204, 7
    %v210 = vadd.f32 %v128, %v207
    %v211 = vadd.f32 %v131, %v204
    %v212 = vmax.f32 %v210, 0.0
    %v213 = vmax.f32 %v211, 0.0
    %214 = vst [vmem:[#allocation11] sm:$0x2] %v212
    %215 = vst [vmem:[#allocation11 + $0x8] sm:$0x2] %v213
    %v218 = vrot.slane %v212, 1
    %v219 = vsel %vm183, %v213, %v218
    %221 = vmatpush.msra.mxu0 %v148
    %222 = vmatpush.msra.mxu0 %v147
    %223 = vmatpush.msra.mxu0 %v146
    %224 = vmatpush.msra.mxu0 %v145
    %225 = vmatpush.msra.mxu0 %v144
    %226 = vmatpush.msra.mxu0 %v143
    %227 = vmatpush.msra.mxu0 %v142
    %228 = vmatpush.msra.mxu0 %v141
    %229 = vmatpush.msra.mxu0 %v140
    %230 = vmatpush.msra.mxu0 %v139
    %231 = vmatpush.msra.mxu0 %v138
    %232 = vmatpush.msra.mxu0 %v137
    %233 = vmatpush.msra.mxu0 %v136
    %234 = vmatpush.msra.mxu0 %v135
    %235 = vmatpush.msra.mxu0 %v134
    %236 = vmatpush.msra.mxu0 %v133
    %237 = vmatmul.f32.gmra.mxu0 %v219
    %v238 = vpop.f32.mrf.mxu0
    %v239 = vadd.f32 0.0, %v238
    %240 = vdwg.mxu0
    %v242 = vrot.slane %v239, 6
    %v243 = vrot.slane %v239, 7
    %v246 = vadd.f32 %v128, %v242
    %v247 = vadd.f32 %v131, %v243
    %v248 = vmax.f32 %v246, 0.0
    %v249 = vmax.f32 %v247, 0.0
    %250 = vst [vmem:[#allocation11] sm:$0x4] %v248
    %251 = vst [vmem:[#allocation11 + $0x8] sm:$0x4] %v249
    %v254 = vrot.slane %v248, 2
    %v255 = vrot.slane %v249, 1
    %v256 = vsel %vm183, %v255, %v254
    %258 = vmatpush.msra.mxu0 %v148
    %259 = vmatpush.msra.mxu0 %v147
    %260 = vmatpush.msra.mxu0 %v146
    %261 = vmatpush.msra.mxu0 %v145
    %262 = vmatpush.msra.mxu0 %v144
    %263 = vmatpush.msra.mxu0 %v143
    %264 = vmatpush.msra.mxu0 %v142
    %265 = vmatpush.msra.mxu0 %v141
    %266 = vmatpush.msra.mxu0 %v140
    %267 = vmatpush.msra.mxu0 %v139
    %268 = vmatpush.msra.mxu0 %v138
    %269 = vmatpush.msra.mxu0 %v137
    %270 = vmatpush.msra.mxu0 %v136
    %271 = vmatpush.msra.mxu0 %v135
    %272 = vmatpush.msra.mxu0 %v134
    %273 = vmatpush.msra.mxu0 %v133
    %274 = vmatmul.f32.gmra.mxu0 %v256
    %v275 = vpop.f32.mrf.mxu0
    %v276 = vadd.f32 0.0, %v275
    %277 = vdwg.mxu0
    %v279 = vrot.slane %v276, 5
    %v280 = vrot.slane %v276, 6
    %v283 = vadd.f32 %v128, %v279
    %v284 = vadd.f32 %v131, %v280
    %v285 = vmax.f32 %v283, 0.0
    %v286 = vmax.f32 %v284, 0.0
    %287 = vst [vmem:[#allocation11] sm:$0x8] %v285
    %288 = vst [vmem:[#allocation11 + $0x8] sm:$0x8] %v286
    %v291 = vrot.slane %v285, 3
    %v292 = vrot.slane %v286, 2
    %v293 = vsel %vm183, %v292, %v291
    %295 = vmatpush.msra.mxu0 %v148
    %296 = vmatpush.msra.mxu0 %v147
    %297 = vmatpush.msra.mxu0 %v146
    %298 = vmatpush.msra.mxu0 %v145
    %299 = vmatpush.msra.mxu0 %v144
    %300 = vmatpush.msra.mxu0 %v143
    %301 = vmatpush.msra.mxu0 %v142
    %302 = vmatpush.msra.mxu0 %v141
    %303 = vmatpush.msra.mxu0 %v140
    %304 = vmatpush.msra.mxu0 %v139
    %305 = vmatpush.msra.mxu0 %v138
    %306 = vmatpush.msra.mxu0 %v137
    %307 = vmatpush.msra.mxu0 %v136
    %308 = vmatpush.msra.mxu0 %v135
    %309 = vmatpush.msra.mxu0 %v134
    %310 = vmatpush.msra.mxu0 %v133
    %311 = vmatmul.f32.gmra.mxu0 %v293
    %v312 = vpop.f32.mrf.mxu0
    %v313 = vadd.f32 0.0, %v312
    %314 = vdwg.mxu0
    %v316 = vrot.slane %v313, 4
    %v317 = vrot.slane %v313, 5
    %v320 = vadd.f32 %v128, %v316
    %v321 = vadd.f32 %v131, %v317
    %v322 = vmax.f32 %v320, 0.0
    %v323 = vmax.f32 %v321, 0.0
    %324 = vst [vmem:[#allocation11] sm:$0x10] %v322
    %325 = vst [vmem:[#allocation11 + $0x8] sm:$0x10] %v323
    %v328 = vrot.slane %v322, 4
    %v329 = vrot.slane %v323, 3
    %v330 = vsel %vm183, %v329, %v328
    %332 = vmatpush.msra.mxu0 %v148
    %333 = vmatpush.msra.mxu0 %v147
    %334 = vmatpush.msra.mxu0 %v146
    %335 = vmatpush.msra.mxu0 %v145
    %336 = vmatpush.msra.mxu0 %v144
    %337 = vmatpush.msra.mxu0 %v143
    %338 = vmatpush.msra.mxu0 %v142
    %339 = vmatpush.msra.mxu0 %v141
    %340 = vmatpush.msra.mxu0 %v140
    %341 = vmatpush.msra.mxu0 %v139
    %342 = vmatpush.msra.mxu0 %v138
    %343 = vmatpush.msra.mxu0 %v137
    %344 = vmatpush.msra.mxu0 %v136
    %345 = vmatpush.msra.mxu0 %v135
    %346 = vmatpush.msra.mxu0 %v134
    %347 = vmatpush.msra.mxu0 %v133
    %348 = vmatmul.f32.gmra.mxu0 %v330
    %v349 = vpop.f32.mrf.mxu0
    %v350 = vadd.f32 0.0, %v349
    %351 = vdwg.mxu0
    %v353 = vrot.slane %v350, 3
    %v354 = vrot.slane %v350, 4
    %v357 = vadd.f32 %v128, %v353
    %v358 = vadd.f32 %v131, %v354
    %v359 = vmax.f32 %v357, 0.0
    %v360 = vmax.f32 %v358, 0.0
    %361 = vst [vmem:[#allocation11] sm:$0x20] %v359
    %362 = vst [vmem:[#allocation11 + $0x8] sm:$0x20] %v360
    %v365 = vrot.slane %v359, 5
    %v366 = vrot.slane %v360, 4
    %v367 = vsel %vm183, %v366, %v365
    %369 = vmatpush.msra.mxu0 %v148
    %370 = vmatpush.msra.mxu0 %v147
    %371 = vmatpush.msra.mxu0 %v146
    %372 = vmatpush.msra.mxu0 %v145
    %373 = vmatpush.msra.mxu0 %v144
    %374 = vmatpush.msra.mxu0 %v143
    %375 = vmatpush.msra.mxu0 %v142
    %376 = vmatpush.msra.mxu0 %v141
    %377 = vmatpush.msra.mxu0 %v140
    %378 = vmatpush.msra.mxu0 %v139
    %379 = vmatpush.msra.mxu0 %v138
    %380 = vmatpush.msra.mxu0 %v137
    %381 = vmatpush.msra.mxu0 %v136
    %382 = vmatpush.msra.mxu0 %v135
    %383 = vmatpush.msra.mxu0 %v134
    %384 = vmatpush.msra.mxu0 %v133
    %385 = vmatmul.f32.gmra.mxu0 %v367
    %v386 = vpop.f32.mrf.mxu0
    %v387 = vadd.f32 0.0, %v386
    %388 = vdwg.mxu0
    %v390 = vrot.slane %v387, 2
    %v391 = vrot.slane %v387, 3
    %v394 = vadd.f32 %v128, %v390
    %v395 = vadd.f32 %v131, %v391
    %v396 = vmax.f32 %v394, 0.0
    %v397 = vmax.f32 %v395, 0.0
    %398 = vst [vmem:[#allocation11] sm:$0x40] %v396
    %399 = vst [vmem:[#allocation11 + $0x8] sm:$0x40] %v397
    %v402 = vrot.slane %v396, 6
    %v403 = vrot.slane %v397, 5
    %v404 = vsel %vm183, %v403, %v402
    %406 = vmatpush.msra.mxu0 %v148
    %407 = vmatpush.msra.mxu0 %v147
    %408 = vmatpush.msra.mxu0 %v146
    %409 = vmatpush.msra.mxu0 %v145
    %410 = vmatpush.msra.mxu0 %v144
    %411 = vmatpush.msra.mxu0 %v143
    %412 = vmatpush.msra.mxu0 %v142
    %413 = vmatpush.msra.mxu0 %v141
    %414 = vmatpush.msra.mxu0 %v140
    %415 = vmatpush.msra.mxu0 %v139
    %416 = vmatpush.msra.mxu0 %v138
    %417 = vmatpush.msra.mxu0 %v137
    %418 = vmatpush.msra.mxu0 %v136
    %419 = vmatpush.msra.mxu0 %v135
    %420 = vmatpush.msra.mxu0 %v134
    %421 = vmatpush.msra.mxu0 %v133
    %422 = vmatmul.f32.gmra.mxu0 %v404
    %v423 = vpop.f32.mrf.mxu0
    %v424 = vadd.f32 0.0, %v423
    %425 = vdwg.mxu0
    %v427 = vrot.slane %v424, 1
    %v428 = vrot.slane %v424, 2
    %v431 = vadd.f32 %v128, %v427
    %v432 = vadd.f32 %v131, %v428
    %v433 = vmax.f32 %v431, 0.0
    %v434 = vmax.f32 %v432, 0.0
    %435 = vst [vmem:[#allocation11] sm:$0x80] %v433
    %436 = vst [vmem:[#allocation11 + $0x8] sm:$0x80] %v434
    %v439 = vrot.slane %v434, 7
    %442 = vst [vmem:[#allocation2 - $0x7] sm:$0x80] %v433
    %443 = vst [vmem:[#allocation2 + $0x1] sm:$0x1] %v439
    %v444 = vld [vmem:[#allocation11] sm:$0xff]
    %v445 = vld [vmem:[#allocation11 + $0x8] sm:$0xff]
    %v446 = vld [vmem:[#allocation9] sm:$0xff]
    %v447 = vld [vmem:[#allocation9 + $0x8] sm:$0xff]
    %v448 = vld [vmem:[#allocation9 + $0x10] sm:$0xff]
    %v449 = vld [vmem:[#allocation9 + $0x18] sm:$0xff]
    %v450 = vld [vmem:[#allocation9 + $0x20] sm:$0xff]
    %v451 = vld [vmem:[#allocation9 + $0x28] sm:$0xff]
    %v452 = vld [vmem:[#allocation9 + $0x30] sm:$0xff]
    %v453 = vld [vmem:[#allocation9 + $0x38] sm:$0xff]
    %v454 = vld [vmem:[#allocation9 + $0x40] sm:$0xff]
    %v455 = vld [vmem:[#allocation9 + $0x48] sm:$0xff]
    %v456 = vld [vmem:[#allocation9 + $0x50] sm:$0xff]
    %v457 = vld [vmem:[#allocation9 + $0x58] sm:$0xff]
    %v458 = vld [vmem:[#allocation9 + $0x60] sm:$0xff]
    %v459 = vld [vmem:[#allocation9 + $0x68] sm:$0xff]
    %v460 = vld [vmem:[#allocation9 + $0x70] sm:$0xff]
    %v461 = vld [vmem:[#allocation9 + $0x78] sm:$0xff]
    %v462 = vld [vmem:[%s5] sm:$0x1]
    %v464 = vperm.slane %v462, 0
    %466 = vmatpush.msra.mxu0 %v461
    %467 = vmatpush.msra.mxu0 %v460
    %468 = vmatpush.msra.mxu0 %v459
    %469 = vmatpush.msra.mxu0 %v458
    %470 = vmatpush.msra.mxu0 %v457
    %471 = vmatpush.msra.mxu0 %v456
    %472 = vmatpush.msra.mxu0 %v455
    %473 = vmatpush.msra.mxu0 %v454
    %474 = vmatpush.msra.mxu0 %v453
    %475 = vmatpush.msra.mxu0 %v452
    %476 = vmatpush.msra.mxu0 %v451
    %477 = vmatpush.msra.mxu0 %v450
    %478 = vmatpush.msra.mxu0 %v449
    %479 = vmatpush.msra.mxu0 %v448
    %480 = vmatpush.msra.mxu0 %v447
    %481 = vmatpush.msra.mxu0 %v446
    %482 = vmatmul.f32.gmra.mxu0 %v444
    %v483 = vpop.f32.mrf.mxu0
    %v484 = vadd.f32 %v464, %v483
    %485 = vmatmul.f32.gmra.mxu0 %v445
    %v486 = vpop.f32.mrf.mxu0
    %v487 = vadd.f32 %v464, %v486
    %488 = vdwg.mxu0
    %489 = vst [vmem:[#allocation12] sm:$0xff] %v484
    %490 = vst [vmem:[#allocation12 + $0x8] sm:$0xff] %v487
    // Predicated region
    $region46: #{tpu_custom_call.1} parent=1 // pred_check
      _
    $region47: #{tpu_custom_call.1} parent=1 // pred_check_branch
      %492 = sbr.rel (0) target = $region49
    $region48: #{tpu_custom_call.1} parent=1 // pred_region
      %494 = vsyncadd [#allocation5], 0
      %s495 = sshll.u32 [#allocation11], 4
      %s496 = int_to_ptr.vmem [resolvable:$true] %s495
      %s497 = sshll.u32 %s6, 4
      %s498 = int_to_ptr.hbm [resolvable:$true] %s497
      %503 = dma.vmem_to_hbm [thread:$0]  %s496, 256, %s498, [#allocation5], 128, 128, 8
    $region49: #{tpu_custom_call.1} parent=1 // pred_fallthru
      _
    // Predicated region
    $region50: #{tpu_custom_call.1} parent=1 // pred_check
      _
    $region51: #{tpu_custom_call.1} parent=1 // pred_check_branch
      %505 = sbr.rel (0) target = $region53
    $region52: #{tpu_custom_call.1} parent=1 // pred_region
      %507 = vsyncadd [#allocation13], 0
      %s508 = sshll.u32 [#allocation12], 4
      %s509 = int_to_ptr.vmem [resolvable:$true] %s508
      %s510 = sshll.u32 %s7, 4
      %s511 = int_to_ptr.hbm [resolvable:$true] %s510
      %516 = dma.vmem_to_hbm [thread:$0]  %s509, 256, %s511, [#allocation13], 128, 128, 8
    $region53: #{tpu_custom_call.1} parent=1 // pred_fallthru
      _
    // Predicated region
    $region54: #{tpu_custom_call.1} parent=1 // pred_check
      _
    $region55: #{tpu_custom_call.1} parent=1 // pred_check_branch
      %518 = sbr.rel (0) target = $region57
    $region56: #{tpu_custom_call.1} parent=1 // pred_region
      %520 = dma.done [#allocation5], 256
    $region57: #{tpu_custom_call.1} parent=1 // pred_fallthru
      _
    // Predicated region
    $region58: #{tpu_custom_call.1} parent=1 // pred_check
      _
    $region59: #{tpu_custom_call.1} parent=1 // pred_check_branch
      %522 = sbr.rel (0) target = $region61
    $region60: #{tpu_custom_call.1} parent=1 // pred_region
      %524 = dma.done [#allocation13], 256
    $region61: #{tpu_custom_call.1} parent=1 // pred_fallthru
      _
    %525 = vsyncpa [#allocation4], 1
    %526 = vsyncpa [#allocation7], 1
    %527 = vsyncpa [#allocation10], 1
    %528 = vsyncpa [#allocation5], 1
    %529 = vsyncpa [#allocation13], 1

// kernel: tpu_custom_call.1
$region0: #{tpu_custom_call.1}
  #allocation0 [shape = 'u32[]', space=smem, size = 0x4, offset = 0x4, fixed_abs, tag = 'smem constant byte address 0x4 - core index']
  #allocation1 [shape = 'u32[72,128]{1,0:T(1,128)}', space=vmem, size = 0x9000, scoped, tag = 'internal scratch']
  #allocation2 [shape = 'f32[2,128]{1,0:T(2,128)}', space=vmem, size = 0x400, scoped, tag = 'scratch operand']
  %s0 = inlined_call_operand.hbm [shape: f32[2,8,16], index: 0, kind: input, shape index: {}]
  %s1 = inlined_call_operand.hbm [shape: f32[16,128], index: 1, kind: input, shape index: {}]
  %s2 = inlined_call_operand.hbm [shape: f32[128,128], index: 2, kind: input, shape index: {}]
  %s3 = inlined_call_operand.hbm [shape: f32[128,128], index: 3, kind: input, shape index: {}]
  %s4 = inlined_call_operand.vmem [shape: f32[1,128], index: 4, kind: input, shape index: {}]
  %s5 = inlined_call_operand.vmem [shape: f32[1,128], index: 5, kind: input, shape index: {}]
  %s6 = inlined_call_operand.hbm [shape: f32[2,8,128], index: 6, kind: output, shape index: {0}]
  %s7 = inlined_call_operand.hbm [shape: f32[2,8,128], index: 7, kind: output, shape index: {1}]
  %8 = xla_tuple %s6, %s7
  %s9 = sld [smem:[#allocation0]]
  $region62: #{tpu_custom_call.1} parent=0
    _
  %s11 = ssub.s32 1, %s9
  %s12 = scalar_select 0, %s11, %s9
  $region1: #{tpu_custom_call.1} parent=0
    #allocation3 [shape = 'u8[8192]{0}', space=vmem, size = 0x2000, scoped, tag = 'input window, operand 0, single buffered']
    #allocation4 [shape = 's32[1]{0}', space=sflag, size = 0x4, scoped, tag = 'scoped memory for tpu_custom_call.1']
    #allocation5 [shape = 's32[1]{0}', space=sflag, size = 0x4, scoped, tag = 'scoped memory for tpu_custom_call.1']
    #allocation6 [shape = 'u8[8192]{0}', space=vmem, size = 0x2000, scoped, tag = 'input window, operand 1, single buffered']
    #allocation7 [shape = 's32[1]{0}', space=sflag, size = 0x4, scoped, tag = 'scoped memory for tpu_custom_call.1']
    #allocation8 [shape = 'u8[65536]{0}', space=vmem, size = 0x10000, scoped, tag = 'input window, operand 2, single buffered']
    #allocation9 [shape = 'u8[65536]{0}', space=vmem, size = 0x10000, scoped, tag = 'input window, operand 3, single buffered']
    #allocation10 [shape = 's32[1]{0}', space=sflag, size = 0x4, scoped, tag = 'scoped memory for tpu_custom_call.1']
    #allocation11 [shape = 'u8[8192]{0}', space=vmem, size = 0x2000, scoped, tag = 'output window, operand 0, single buffered']
    #allocation12 [shape = 'u8[8192]{0}', space=vmem, size = 0x2000, scoped, tag = 'output window, operand 1, single buffered']
    #allocation13 [shape = 's32[1]{0}', space=sflag, size = 0x4, scoped, tag = 'scoped memory for tpu_custom_call.1']
    %13 = vsyncpa [#allocation4], 0
    %14 = vsyncpa [#allocation7], 0
    %15 = vsyncpa [#allocation10], 0
    %16 = vsyncpa [#allocation5], 0
    %17 = vsyncpa [#allocation13], 0
    // Predicated region
    $region2: #{tpu_custom_call.1} parent=1 // pred_check
      _
    $region3: #{tpu_custom_call.1} parent=1 // pred_check_branch
      %19 = sbr.rel (0) target = $region5
    $region4: #{tpu_custom_call.1} parent=1 // pred_region
      %21 = vsyncadd [#allocation4], 0
      %s22 = sshll.u32 %s0, 4
      %s23 = int_to_ptr.hbm [resolvable:$true] %s22
      %s24 = sshll.u32 [#allocation3], 4
      %s25 = int_to_ptr.vmem [resolvable:$true] %s24
      %30 = dma.hbm_to_vmem [thread:$0]  %s23, 256, %s25, [#allocation4], 128, 128, 8
    $region5: #{tpu_custom_call.1} parent=1 // pred_fallthru
      _
    // Predicated region
    $region6: #{tpu_custom_call.1} parent=1 // pred_check
      _
    $region7: #{tpu_custom_call.1} parent=1 // pred_check_branch
      %32 = sbr.rel (0) target = $region9
    $region8: #{tpu_custom_call.1} parent=1 // pred_region
      %34 = vsyncadd [#allocation7], 0
      %s35 = sshll.u32 %s1, 4
      %s36 = int_to_ptr.hbm [resolvable:$true] %s35
      %s37 = sshll.u32 [#allocation6], 4
      %s38 = int_to_ptr.vmem [resolvable:$true] %s37
      %43 = dma.hbm_to_vmem [thread:$0]  %s36, 256, %s38, [#allocation7], 128, 128, 8
    $region9: #{tpu_custom_call.1} parent=1 // pred_fallthru
      _
    // Predicated region
    $region10: #{tpu_custom_call.1} parent=1 // pred_check
      _
    $region11: #{tpu_custom_call.1} parent=1 // pred_check_branch
      %45 = sbr.rel (0) target = $region13
    $region12: #{tpu_custom_call.1} parent=1 // pred_region
      %47 = vsyncadd [#allocation7], 0
      %s48 = sshll.u32 %s2, 4
      %s49 = int_to_ptr.hbm [resolvable:$true] %s48
      %s50 = sshll.u32 [#allocation8], 4
      %s51 = int_to_ptr.vmem [resolvable:$true] %s50
      %56 = dma.hbm_to_vmem [thread:$0]  %s49, 2048, %s51, [#allocation7], 128, 128, 8
    $region13: #{tpu_custom_call.1} parent=1 // pred_fallthru
      _
    // Predicated region
    $region14: #{tpu_custom_call.1} parent=1 // pred_check
      _
    $region15: #{tpu_custom_call.1} parent=1 // pred_check_branch
      %58 = sbr.rel (0) target = $region17
    $region16: #{tpu_custom_call.1} parent=1 // pred_region
      %60 = vsyncadd [#allocation10], 0
      %s61 = sshll.u32 %s3, 4
      %s62 = int_to_ptr.hbm [resolvable:$true] %s61
      %s63 = sshll.u32 [#allocation9], 4
      %s64 = int_to_ptr.vmem [resolvable:$true] %s63
      %69 = dma.hbm_to_vmem [thread:$0]  %s62, 2048, %s64, [#allocation10], 128, 128, 8
    $region17: #{tpu_custom_call.1} parent=1 // pred_fallthru
      _
    // Predicated region
    $region18: #{tpu_custom_call.1} parent=1 // pred_check
      _
    $region19: #{tpu_custom_call.1} parent=1 // pred_check_branch
      %71 = sbr.rel (0) target = $region21
    $region20: #{tpu_custom_call.1} parent=1 // pred_region
      _
    $region21: #{tpu_custom_call.1} parent=1 // pred_fallthru
      _
    // Predicated region
    $region22: #{tpu_custom_call.1} parent=1 // pred_check
      _
    $region23: #{tpu_custom_call.1} parent=1 // pred_check_branch
      %73 = sbr.rel (0) target = $region25
    $region24: #{tpu_custom_call.1} parent=1 // pred_region
      _
    $region25: #{tpu_custom_call.1} parent=1 // pred_fallthru
      _
    // Predicated region
    $region26: #{tpu_custom_call.1} parent=1 // pred_check
      _
    $region27: #{tpu_custom_call.1} parent=1 // pred_check_branch
      %75 = sbr.rel (0) target = $region29
    $region28: #{tpu_custom_call.1} parent=1 // pred_region
      %77 = dma.done [#allocation4], 256
    $region29: #{tpu_custom_call.1} parent=1 // pred_fallthru
      _
    // Predicated region
    $region30: #{tpu_custom_call.1} parent=1 // pred_check
      _
    $region31: #{tpu_custom_call.1} parent=1 // pred_check_branch
      %79 = sbr.rel (0) target = $region33
    $region32: #{tpu_custom_call.1} parent=1 // pred_region
      %81 = dma.done [#allocation7], 256
    $region33: #{tpu_custom_call.1} parent=1 // pred_fallthru
      _
    // Predicated region
    $region34: #{tpu_custom_call.1} parent=1 // pred_check
      _
    $region35: #{tpu_custom_call.1} parent=1 // pred_check_branch
      %83 = sbr.rel (0) target = $region37
    $region36: #{tpu_custom_call.1} parent=1 // pred_region
      %85 = dma.done [#allocation7], 2048
    $region37: #{tpu_custom_call.1} parent=1 // pred_fallthru
      _
    // Predicated region
    $region38: #{tpu_custom_call.1} parent=1 // pred_check
      _
    $region39: #{tpu_custom_call.1} parent=1 // pred_check_branch
      %87 = sbr.rel (0) target = $region41
    $region40: #{tpu_custom_call.1} parent=1 // pred_region
      %89 = dma.done [#allocation10], 2048
    $region41: #{tpu_custom_call.1} parent=1 // pred_fallthru
      _
    %p90 = scmp.eq.s32.totalorder 0, 0
    // Predicated region
    $region42: #{tpu_custom_call.1} parent=1 // pred_check
      %p91 = pneg %p90
    $region43: #{tpu_custom_call.1} parent=1 // pred_check_branch
      %93 = sbr.rel (%p91) target = $region45
    $region44: #{tpu_custom_call.1} parent=1 // pred_region
      %94 = vst [vmem:[#allocation2] sm:$0x3] 0.0
    $region45: #{tpu_custom_call.1} parent=1 // pred_fallthru
      _
    %v95 = vld [vmem:[#allocation3] sm:$0xff]
    %v96 = vld [vmem:[#allocation3 + $0x8] sm:$0xff]
    %v97 = vld [vmem:[#allocation6] sm:$0xff]
    %v98 = vld [vmem:[#allocation6 + $0x8] sm:$0xff]
    %v99 = vld [vmem:[%s4] sm:$0x1]
    %v101 = vperm.slane %v99, 0
    %vm103 = vcmask 130048
    %v105 = vsel %vm103, %v95, 0
    %v108 = vsel %vm103, %v96, 0
    %110 = vmatpush.msra.mxu0 0.0
    %111 = vmatpush.msra.mxu0 0.0
    %112 = vmatpush.msra.mxu0 0.0
    %113 = vmatpush.msra.mxu0 0.0
    %114 = vmatpush.msra.mxu0 0.0
    %115 = vmatpush.msra.mxu0 0.0
    %116 = vmatpush.msra.mxu0 0.0
    %117 = vmatpush.msra.mxu0 0.0
    %118 = vmatpush.msra.mxu0 0.0
    %119 = vmatpush.msra.mxu0 0.0
    %120 = vmatpush.msra.mxu0 0.0
    %121 = vmatpush.msra.mxu0 0.0
    %122 = vmatpush.msra.mxu0 0.0
    %123 = vmatpush.msra.mxu0 0.0
    %124 = vmatpush.msra.mxu0 %v98
    %125 = vmatpush.msra.mxu0 %v97
    %126 = vmatmul.f32.gmra.mxu0 %v105
    %v127 = vpop.f32.mrf.mxu0
    %v128 = vadd.f32 %v101, %v127
    %129 = vmatmul.f32.gmra.mxu0 %v108
    %v130 = vpop.f32.mrf.mxu0
    %v131 = vadd.f32 %v101, %v130
    %132 = vdwg.mxu0
    %v133 = vld [vmem:[#allocation8] sm:$0xff]
    %v134 = vld [vmem:[#allocation8 + $0x8] sm:$0xff]
    %v135 = vld [vmem:[#allocation8 + $0x10] sm:$0xff]
    %v136 = vld [vmem:[#allocation8 + $0x18] sm:$0xff]
    %v137 = vld [vmem:[#allocation8 + $0x20] sm:$0xff]
    %v138 = vld [vmem:[#allocation8 + $0x28] sm:$0xff]
    %v139 = vld [vmem:[#allocation8 + $0x30] sm:$0xff]
    %v140 = vld [vmem:[#allocation8 + $0x38] sm:$0xff]
    %v141 = vld [vmem:[#allocation8 + $0x40] sm:$0xff]
    %v142 = vld [vmem:[#allocation8 + $0x48] sm:$0xff]
    %v143 = vld [vmem:[#allocation8 + $0x50] sm:$0xff]
    %v144 = vld [vmem:[#allocation8 + $0x58] sm:$0xff]
    %v145 = vld [vmem:[#allocation8 + $0x60] sm:$0xff]
    %v146 = vld [vmem:[#allocation8 + $0x68] sm:$0xff]
    %v147 = vld [vmem:[#allocation8 + $0x70] sm:$0xff]
    %v148 = vld [vmem:[#allocation8 + $0x78] sm:$0xff]
    %v149 = vld [vmem:[#allocation2] sm:$0x3]
    %150 = vmatpush.msra.mxu0 %v148
    %151 = vmatpush.msra.mxu0 %v147
    %152 = vmatpush.msra.mxu0 %v146
    %153 = vmatpush.msra.mxu0 %v145
    %154 = vmatpush.msra.mxu0 %v144
    %155 = vmatpush.msra.mxu0 %v143
    %156 = vmatpush.msra.mxu0 %v142
    %157 = vmatpush.msra.mxu0 %v141
    %158 = vmatpush.msra.mxu0 %v140
    %159 = vmatpush.msra.mxu0 %v139
    %160 = vmatpush.msra.mxu0 %v138
    %161 = vmatpush.msra.mxu0 %v137
    %162 = vmatpush.msra.mxu0 %v136
    %163 = vmatpush.msra.mxu0 %v135
    %164 = vmatpush.msra.mxu0 %v134
    %165 = vmatpush.msra.mxu0 %v133
    %166 = vmatmul.f32.gmra.mxu0 %v149
    %v167 = vpop.f32.mrf.mxu0
    %v168 = vadd.f32 0.0, %v167
    %169 = vdwg.mxu0
    %v171 = vrot.slane %v168, 1
    %v174 = vadd.f32 %v128, %v168
    %v175 = vadd.f32 %v131, %v171
    %v176 = vmax.f32 %v174, 0.0
    %v177 = vmax.f32 %v175, 0.0
    %178 = vst [vmem:[#allocation11] sm:$0x1] %v176
    %179 = vst [vmem:[#allocation11 + $0x8] sm:$0x1] %v177
    %v182 = vrot.slane %v177, 7
    %vm183 = vcmask 1041409
    %v184 = vsel %vm183, %v182, %v176
    %186 = vmatpush.msra.mxu0 %v148
    %187 = vmatpush.msra.mxu0 %v147
    %188 = vmatpush.msra.mxu0 %v146
    %189 = vmatpush.msra.mxu0 %v145
    %190 = vmatpush.msra.mxu0 %v144
    %191 = vmatpush.msra.mxu0 %v143
    %192 = vmatpush.msra.mxu0 %v142
    %193 = vmatpush.msra.mxu0 %v141
    %194 = vmatpush.msra.mxu0 %v140
    %195 = vmatpush.msra.mxu0 %v139
    %196 = vmatpush.msra.mxu0 %v138
    %197 = vmatpush.msra.mxu0 %v137
    %198 = vmatpush.msra.mxu0 %v136
    %199 = vmatpush.msra.mxu0 %v135
    %200 = vmatpush.msra.mxu0 %v134
    %201 = vmatpush.msra.mxu0 %v133
    %202 = vmatmul.f32.gmra.mxu0 %v184
    %v203 = vpop.f32.mrf.mxu0
    %v204 = vadd.f32 0.0, %v203
    %205 = vdwg.mxu0
    %v207 = vrot.slane %v204, 7
    %v210 = vadd.f32 %v128, %v207
    %v211 = vadd.f32 %v131, %v204
    %v212 = vmax.f32 %v210, 0.0
    %v213 = vmax.f32 %v211, 0.0
    %214 = vst [vmem:[#allocation11] sm:$0x2] %v212
    %215 = vst [vmem:[#allocation11 + $0x8] sm:$0x2] %v213
    %v218 = vrot.slane %v212, 1
    %v219 = vsel %vm183, %v213, %v218
    %221 = vmatpush.msra.mxu0 %v148
    %222 = vmatpush.msra.mxu0 %v147
    %223 = vmatpush.msra.mxu0 %v146
    %224 = vmatpush.msra.mxu0 %v145
    %225 = vmatpush.msra.mxu0 %v144
    %226 = vmatpush.msra.mxu0 %v143
    %227 = vmatpush.msra.mxu0 %v142
    %228 = vmatpush.msra.mxu0 %v141
    %229 = vmatpush.msra.mxu0 %v140
    %230 = vmatpush.msra.mxu0 %v139
    %231 = vmatpush.msra.mxu0 %v138
    %232 = vmatpush.msra.mxu0 %v137
    %233 = vmatpush.msra.mxu0 %v136
    %234 = vmatpush.msra.mxu0 %v135
    %235 = vmatpush.msra.mxu0 %v134
    %236 = vmatpush.msra.mxu0 %v133
    %237 = vmatmul.f32.gmra.mxu0 %v219
    %v238 = vpop.f32.mrf.mxu0
    %v239 = vadd.f32 0.0, %v238
    %240 = vdwg.mxu0
    %v242 = vrot.slane %v239, 6
    %v243 = vrot.slane %v239, 7
    %v246 = vadd.f32 %v128, %v242
    %v247 = vadd.f32 %v131, %v243
    %v248 = vmax.f32 %v246, 0.0
    %v249 = vmax.f32 %v247, 0.0
    %250 = vst [vmem:[#allocation11] sm:$0x4] %v248
    %251 = vst [vmem:[#allocation11 + $0x8] sm:$0x4] %v249
    %v254 = vrot.slane %v248, 2
    %v255 = vrot.slane %v249, 1
    %v256 = vsel %vm183, %v255, %v254
    %258 = vmatpush.msra.mxu0 %v148
    %259 = vmatpush.msra.mxu0 %v147
    %260 = vmatpush.msra.mxu0 %v146
    %261 = vmatpush.msra.mxu0 %v145
    %262 = vmatpush.msra.mxu0 %v144
    %263 = vmatpush.msra.mxu0 %v143
    %264 = vmatpush.msra.mxu0 %v142
    %265 = vmatpush.msra.mxu0 %v141
    %266 = vmatpush.msra.mxu0 %v140
    %267 = vmatpush.msra.mxu0 %v139
    %268 = vmatpush.msra.mxu0 %v138
    %269 = vmatpush.msra.mxu0 %v137
    %270 = vmatpush.msra.mxu0 %v136
    %271 = vmatpush.msra.mxu0 %v135
    %272 = vmatpush.msra.mxu0 %v134
    %273 = vmatpush.msra.mxu0 %v133
    %274 = vmatmul.f32.gmra.mxu0 %v256
    %v275 = vpop.f32.mrf.mxu0
    %v276 = vadd.f32 0.0, %v275
    %277 = vdwg.mxu0
    %v279 = vrot.slane %v276, 5
    %v280 = vrot.slane %v276, 6
    %v283 = vadd.f32 %v128, %v279
    %v284 = vadd.f32 %v131, %v280
    %v285 = vmax.f32 %v283, 0.0
    %v286 = vmax.f32 %v284, 0.0
    %287 = vst [vmem:[#allocation11] sm:$0x8] %v285
    %288 = vst [vmem:[#allocation11 + $0x8] sm:$0x8] %v286
    %v291 = vrot.slane %v285, 3
    %v292 = vrot.slane %v286, 2
    %v293 = vsel %vm183, %v292, %v291
    %295 = vmatpush.msra.mxu0 %v148
    %296 = vmatpush.msra.mxu0 %v147
    %297 = vmatpush.msra.mxu0 %v146
    %298 = vmatpush.msra.mxu0 %v145
    %299 = vmatpush.msra.mxu0 %v144
    %300 = vmatpush.msra.mxu0 %v143
    %301 = vmatpush.msra.mxu0 %v142
    %302 = vmatpush.msra.mxu0 %v141
    %303 = vmatpush.msra.mxu0 %v140
    %304 = vmatpush.msra.mxu0 %v139
    %305 = vmatpush.msra.mxu0 %v138
    %306 = vmatpush.msra.mxu0 %v137
    %307 = vmatpush.msra.mxu0 %v136
    %308 = vmatpush.msra.mxu0 %v135
    %309 = vmatpush.msra.mxu0 %v134
    %310 = vmatpush.msra.mxu0 %v133
    %311 = vmatmul.f32.gmra.mxu0 %v293
    %v312 = vpop.f32.mrf.mxu0
    %v313 = vadd.f32 0.0, %v312
    %314 = vdwg.mxu0
    %v316 = vrot.slane %v313, 4
    %v317 = vrot.slane %v313, 5
    %v320 = vadd.f32 %v128, %v316
    %v321 = vadd.f32 %v131, %v317
    %v322 = vmax.f32 %v320, 0.0
    %v323 = vmax.f32 %v321, 0.0
    %324 = vst [vmem:[#allocation11] sm:$0x10] %v322
    %325 = vst [vmem:[#allocation11 + $0x8] sm:$0x10] %v323
    %v328 = vrot.slane %v322, 4
    %v329 = vrot.slane %v323, 3
    %v330 = vsel %vm183, %v329, %v328
    %332 = vmatpush.msra.mxu0 %v148
    %333 = vmatpush.msra.mxu0 %v147
    %334 = vmatpush.msra.mxu0 %v146
    %335 = vmatpush.msra.mxu0 %v145
    %336 = vmatpush.msra.mxu0 %v144
    %337 = vmatpush.msra.mxu0 %v143
    %338 = vmatpush.msra.mxu0 %v142
    %339 = vmatpush.msra.mxu0 %v141
    %340 = vmatpush.msra.mxu0 %v140
    %341 = vmatpush.msra.mxu0 %v139
    %342 = vmatpush.msra.mxu0 %v138
    %343 = vmatpush.msra.mxu0 %v137
    %344 = vmatpush.msra.mxu0 %v136
    %345 = vmatpush.msra.mxu0 %v135
    %346 = vmatpush.msra.mxu0 %v134
    %347 = vmatpush.msra.mxu0 %v133
    %348 = vmatmul.f32.gmra.mxu0 %v330
    %v349 = vpop.f32.mrf.mxu0
    %v350 = vadd.f32 0.0, %v349
    %351 = vdwg.mxu0
    %v353 = vrot.slane %v350, 3
    %v354 = vrot.slane %v350, 4
    %v357 = vadd.f32 %v128, %v353
    %v358 = vadd.f32 %v131, %v354
    %v359 = vmax.f32 %v357, 0.0
    %v360 = vmax.f32 %v358, 0.0
    %361 = vst [vmem:[#allocation11] sm:$0x20] %v359
    %362 = vst [vmem:[#allocation11 + $0x8] sm:$0x20] %v360
    %v365 = vrot.slane %v359, 5
    %v366 = vrot.slane %v360, 4
    %v367 = vsel %vm183, %v366, %v365
    %369 = vmatpush.msra.mxu0 %v148
    %370 = vmatpush.msra.mxu0 %v147
    %371 = vmatpush.msra.mxu0 %v146
    %372 = vmatpush.msra.mxu0 %v145
    %373 = vmatpush.msra.mxu0 %v144
    %374 = vmatpush.msra.mxu0 %v143
    %375 = vmatpush.msra.mxu0 %v142
    %376 = vmatpush.msra.mxu0 %v141
    %377 = vmatpush.msra.mxu0 %v140
    %378 = vmatpush.msra.mxu0 %v139
    %379 = vmatpush.msra.mxu0 %v138
    %380 = vmatpush.msra.mxu0 %v137
    %381 = vmatpush.msra.mxu0 %v136
    %382 = vmatpush.msra.mxu0 %v135
    %383 = vmatpush.msra.mxu0 %v134
    %384 = vmatpush.msra.mxu0 %v133
    %385 = vmatmul.f32.gmra.mxu0 %v367
    %v386 = vpop.f32.mrf.mxu0
    %v387 = vadd.f32 0.0, %v386
    %388 = vdwg.mxu0
    %v390 = vrot.slane %v387, 2
    %v391 = vrot.slane %v387, 3
    %v394 = vadd.f32 %v128, %v390
    %v395 = vadd.f32 %v131, %v391
    %v396 = vmax.f32 %v394, 0.0
    %v397 = vmax.f32 %v395, 0.0
    %398 = vst [vmem:[#allocation11] sm:$0x40] %v396
    %399 = vst [vmem:[#allocation11 + $0x8] sm:$0x40] %v397
    %v402 = vrot.slane %v396, 6
    %v403 = vrot.slane %v397, 5
    %v404 = vsel %vm183, %v403, %v402
    %406 = vmatpush.msra.mxu0 %v148
    %407 = vmatpush.msra.mxu0 %v147
    %408 = vmatpush.msra.mxu0 %v146
    %409 = vmatpush.msra.mxu0 %v145
    %410 = vmatpush.msra.mxu0 %v144
    %411 = vmatpush.msra.mxu0 %v143
    %412 = vmatpush.msra.mxu0 %v142
    %413 = vmatpush.msra.mxu0 %v141
    %414 = vmatpush.msra.mxu0 %v140
    %415 = vmatpush.msra.mxu0 %v139
    %416 = vmatpush.msra.mxu0 %v138
    %417 = vmatpush.msra.mxu0 %v137
    %418 = vmatpush.msra.mxu0 %v136
    %419 = vmatpush.msra.mxu0 %v135
    %420 = vmatpush.msra.mxu0 %v134
    %421 = vmatpush.msra.mxu0 %v133
    %422 = vmatmul.f32.gmra.mxu0 %v404
    %v423 = vpop.f32.mrf.mxu0
    %v424 = vadd.f32 0.0, %v423
    %425 = vdwg.mxu0
    %v427 = vrot.slane %v424, 1
    %v428 = vrot.slane %v424, 2
    %v431 = vadd.f32 %v128, %v427
    %v432 = vadd.f32 %v131, %v428
    %v433 = vmax.f32 %v431, 0.0
    %v434 = vmax.f32 %v432, 0.0
    %435 = vst [vmem:[#allocation11] sm:$0x80] %v433
    %436 = vst [vmem:[#allocation11 + $0x8] sm:$0x80] %v434
    %v439 = vrot.slane %v434, 7
    %442 = vst [vmem:[#allocation2 - $0x7] sm:$0x80] %v433
    %443 = vst [vmem:[#allocation2 + $0x1] sm:$0x1] %v439
    %v444 = vld [vmem:[#allocation11] sm:$0xff]
    %v445 = vld [vmem:[#allocation11 + $0x8] sm:$0xff]
    %v446 = vld [vmem:[#allocation9] sm:$0xff]
    %v447 = vld [vmem:[#allocation9 + $0x8] sm:$0xff]
    %v448 = vld [vmem:[#allocation9 + $0x10] sm:$0xff]
    %v449 = vld [vmem:[#allocation9 + $0x18] sm:$0xff]
    %v450 = vld [vmem:[#allocation9 + $0x20] sm:$0xff]
    %v451 = vld [vmem:[#allocation9 + $0x28] sm:$0xff]
    %v452 = vld [vmem:[#allocation9 + $0x30] sm:$0xff]
    %v453 = vld [vmem:[#allocation9 + $0x38] sm:$0xff]
    %v454 = vld [vmem:[#allocation9 + $0x40] sm:$0xff]
    %v455 = vld [vmem:[#allocation9 + $0x48] sm:$0xff]
    %v456 = vld [vmem:[#allocation9 + $0x50] sm:$0xff]
    %v457 = vld [vmem:[#allocation9 + $0x58] sm:$0xff]
    %v458 = vld [vmem:[#allocation9 + $0x60] sm:$0xff]
    %v459 = vld [vmem:[#allocation9 + $0x68] sm:$0xff]
    %v460 = vld [vmem:[#allocation9 + $0x70] sm:$0xff]
    %v461 = vld [vmem:[#allocation9 + $0x78] sm:$0xff]
    %v462 = vld [vmem:[%s5] sm:$0x1]
    %v464 = vperm.slane %v462, 0
    %466 = vmatpush.msra.mxu0 %v461
    %467 = vmatpush.msra.mxu0 %v460
    %468 = vmatpush.msra.mxu0 %v459
    %469 = vmatpush.msra.mxu0 %v458
    %470 = vmatpush.msra.mxu0 %v457
    %471 = vmatpush.msra.mxu0 %v456
    %472 = vmatpush.msra.mxu0 %v455
    %473 = vmatpush.msra.mxu0 %v454
    %474 = vmatpush.msra.mxu0 %v453
    %475 = vmatpush.msra.mxu0 %v452
    %476 = vmatpush.msra.mxu0 %v451
    %477 = vmatpush.msra.mxu0 %v450
    %478 = vmatpush.msra.mxu0 %v449
    %479 = vmatpush.msra.mxu0 %v448
    %480 = vmatpush.msra.mxu0 %v447
    %481 = vmatpush.msra.mxu0 %v446
    %482 = vmatmul.f32.gmra.mxu0 %v444
    %v483 = vpop.f32.mrf.mxu0
    %v484 = vadd.f32 %v464, %v483
    %485 = vmatmul.f32.gmra.mxu0 %v445
    %v486 = vpop.f32.mrf.mxu0
    %v487 = vadd.f32 %v464, %v486
    %488 = vdwg.mxu0
    %489 = vst [vmem:[#allocation12] sm:$0xff] %v484
    %490 = vst [vmem:[#allocation12 + $0x8] sm:$0xff] %v487
    // Predicated region
    $region46: #{tpu_custom_call.1} parent=1 // pred_check
      _
    $region47: #{tpu_custom_call.1} parent=1 // pred_check_branch
      %492 = sbr.rel (0) target = $region49
    $region48: #{tpu_custom_call.1} parent=1 // pred_region
      %494 = vsyncadd [#allocation5], 0
      %s495 = sshll.u32 [#allocation11], 4
      %s496 = int_to_ptr.vmem [resolvable:$true] %s495
      %s497 = sshll.u32 %s6, 4
      %s498 = int_to_ptr.hbm [resolvable:$true] %s497
      %503 = dma.vmem_to_hbm [thread:$0]  %s496, 256, %s498, [#allocation5], 128, 128, 8
    $region49: #{tpu_custom_call.1} parent=1 // pred_fallthru
      _
    // Predicated region
    $region50: #{tpu_custom_call.1} parent=1 // pred_check
      _
    $region51: #{tpu_custom_call.1} parent=1 // pred_check_branch
      %505 = sbr.rel (0) target = $region53
    $region52: #{tpu_custom_call.1} parent=1 // pred_region
      %507 = vsyncadd [#allocation13], 0
      %s508 = sshll.u32 [#allocation12], 4
      %s509 = int_to_ptr.vmem [resolvable:$true] %s508
      %s510 = sshll.u32 %s7, 4
      %s511 = int_to_ptr.hbm [resolvable:$true] %s510
      %516 = dma.vmem_to_hbm [thread:$0]  %s509, 256, %s511, [#allocation13], 128, 128, 8
    $region53: #{tpu_custom_call.1} parent=1 // pred_fallthru
      _
    // Predicated region
    $region54: #{tpu_custom_call.1} parent=1 // pred_check
      _
    $region55: #{tpu_custom_call.1} parent=1 // pred_check_branch
      %518 = sbr.rel (0) target = $region57
    $region56: #{tpu_custom_call.1} parent=1 // pred_region
      %520 = dma.done [#allocation5], 256
    $region57: #{tpu_custom_call.1} parent=1 // pred_fallthru
      _
    // Predicated region
    $region58: #{tpu_custom_call.1} parent=1 // pred_check
      _
    $region59: #{tpu_custom_call.1} parent=1 // pred_check_branch
      %522 = sbr.rel (0) target = $region61
    $region60: #{tpu_custom_call.1} parent=1 // pred_region
      %524 = dma.done [#allocation13], 256
    $region61: #{tpu_custom_call.1} parent=1 // pred_fallthru
      _
    %525 = vsyncpa [#allocation4], 1
    %526 = vsyncpa [#allocation7], 1
    %527 = vsyncpa [#allocation10], 1
    %528 = vsyncpa [#allocation5], 1
    %529 = vsyncpa [#allocation13], 1

</llo_original>
